<compile_context>
chip_gen: v7x
topology: tpu7x:2x2x1
jax: 0.10.0
libtpu: 0.0.40
codegen_flags: <defaults>
</compile_context>

<pallas_src>
import functools

import numpy as np
import jax
import jax.numpy as jnp
from jax.experimental import pallas as pl
from jax.experimental.pallas import tpu as pltpu

BN_EPS = 1e-5


def _round_up(x, m):
    return (x + m - 1) // m * m


# ----------------------------------------------------------------------------
# Host-side constants: per-tap lane shifts + boundary masks, subsample matrix.
# ----------------------------------------------------------------------------
def _tap_shifts_masks(Hh, Ww, k, pad, nb):
    """For a stride-1 conv on an Hh x Ww image (nb images packed on lanes):
    shift d such that out[q] = in[q + d] for tap (i, j), and the 0/1 boundary
    mask of valid output positions."""
    P = Hh * Ww
    shifts = []
    masks = np.zeros((k * k, 1, nb * P), np.float32)
    hh = np.arange(Hh)[:, None]
    ww = np.arange(Ww)[None, :]
    for i in range(k):
        for j in range(k):
            t = i * k + j
            shifts.append((i - pad) * Ww + (j - pad))
            m = ((hh + i - pad >= 0) & (hh + i - pad < Hh) &
                 (ww + j - pad >= 0) & (ww + j - pad < Ww)).astype(np.float32)
            masks[t, 0, :] = np.tile(m.reshape(-1), nb)
    return shifts, masks


def _subsample_matrix(H, W, Ho, Wo, s, nb):
    """0/1 matrix selecting lane q_out = (ho*Wo+wo) from lane (s*ho)*W + (s*wo),
    block-diagonal over the nb packed images."""
    Pi, Po = H * W, Ho * Wo
    S = np.zeros((nb * Pi, nb * Po), np.float32)
    for n in range(nb):
        for ho in range(Ho):
            for wo in range(Wo):
                S[n * Pi + (ho * s) * W + (wo * s), n * Po + ho * Wo + wo] = 1.0
    return S


# ----------------------------------------------------------------------------
# BN folding into conv weights, laid out for the fused-K matmul:
#   W_fused[(Cout_p), taps*Cin_p],  bias[(Cout_p), 1] (bias stays f32).
# ----------------------------------------------------------------------------
def _fold_bn_fused(w_oihw, bn, cin_p, cout_p, cdt):
    scale = bn["gamma"] / jnp.sqrt(bn["var"] + BN_EPS)
    bias = bn["beta"] - bn["mean"] * scale
    Cout, Cin, KH, KW = w_oihw.shape
    w = jnp.transpose(w_oihw * scale[:, None, None, None], (0, 2, 3, 1))  # (Cout,KH,KW,Cin)
    w = jnp.pad(w, ((0, cout_p - Cout), (0, 0), (0, 0), (0, cin_p - Cin)))
    w = w.reshape(cout_p, KH * KW * cin_p).astype(cdt)
    b = jnp.pad(bias, (0, cout_p - Cout)).reshape(cout_p, 1).astype(jnp.float32)
    return w, b


# ----------------------------------------------------------------------------
# Fused Encoder kernel: one grid step = `nb` batch images packed on lanes.
# Activations are (C, P) tiles (channels on sublanes, batch*spatial on lanes).
# ----------------------------------------------------------------------------
def _make_encoder_kernel(has_ds, taps, roll_full, roll_out, cdt):

    def tap_stack(inp, rolls, m_ref):
        # inp: (C, P) f32 -> (taps*C, P) f32: per-tap lane-rolled + boundary-masked.
        parts = []
        for t in range(taps):
            r = pltpu.roll(inp, rolls[t], axis=1) if rolls[t] else inp
            parts.append(r * m_ref[t])                 # (1, P) mask broadcast over channels
        return jnp.concatenate(parts, axis=0)

    def conv(inp, rolls, m_ref, w_ref, b_ref):
        stk = tap_stack(inp, rolls, m_ref).astype(cdt)  # one MXU push, K = taps*C
        return jnp.dot(w_ref[...], stk, preferred_element_type=jnp.float32) + b_ref[...]

    def kernel(*refs):
        if has_ds:
            (x_ref, mf_ref, mo_ref, s_ref,
             w11_ref, b11_ref, wd_ref, bd_ref,
             w12_ref, b12_ref, w21_ref, b21_ref,
             w22_ref, b22_ref, o_ref) = refs
        else:
            (x_ref, mo_ref,
             w11_ref, b11_ref,
             w12_ref, b12_ref, w21_ref, b21_ref,
             w22_ref, b22_ref, o_ref) = refs

        x = x_ref[0]                                    # (Cin_p, Pi) f32

        # ---- block 1, conv1 + BN + ReLU (+ downsample residual) ----
        if has_ds:
            # stride-s conv == stride-1 conv at input resolution, then exact lane subsample
            stk1 = tap_stack(x, roll_full, mf_ref).astype(cdt)       # (taps*Cin_p, Pi)
            full = jnp.dot(w11_ref[...], stk1, preferred_element_type=jnp.float32)
            c1 = jnp.dot(full.astype(cdt), s_ref[...], preferred_element_type=jnp.float32)
            h1 = jnp.maximum(c1 + b11_ref[...], 0.0)                 # (Cout_p, Po) f32
            # downsample path: 1x1 stride-s conv + BN == subsample, then tiny matmul
            xs = jnp.dot(x.astype(cdt), s_ref[...], preferred_element_type=jnp.float32)
            res = jnp.dot(wd_ref[...], xs.astype(cdt),
                          preferred_element_type=jnp.float32) + bd_ref[...]
        else:
            h1 = jnp.maximum(conv(x, roll_out, mo_ref, w11_ref, b11_ref), 0.0)
            res = x                                      # identity (requires Cin == Cout)

        # ---- block 1, conv2 + BN + residual + ReLU ----
        y1 = jnp.maximum(conv(h1, roll_out, mo_ref, w12_ref, b12_ref) + res, 0.0)

        # ---- block 2 (stride 1, identity residual) ----
        h2 = jnp.maximum(conv(y1, roll_out, mo_ref, w21_ref, b21_ref), 0.0)
        y2 = jnp.maximum(conv(h2, roll_out, mo_ref, w22_ref, b22_ref) + y1, 0.0)

        o_ref[0] = y2.astype(o_ref.dtype)

    return kernel


def _const_spec(arr):
    nd = arr.ndim
    return pl.BlockSpec(arr.shape, lambda g, _nd=nd: (0,) * _nd)


# ----------------------------------------------------------------------------
# Encoder forward: NCHW in -> NCHW out, one pallas_call for the whole module.
# ----------------------------------------------------------------------------
def encoder_forward(x_nchw, params, *, stride, padding, ksize,
                    compute_dtype=jnp.float32):
    N, Cin, H, W = x_nchw.shape
    Ho = (H + 2 * padding - ksize) // stride + 1
    Wo = (W + 2 * padding - ksize) // stride + 1
    P_in, P_out = H * W, Ho * Wo
    taps = ksize * ksize
    has_ds = stride > 1
    cdt = compute_dtype

    b1, b2 = params["block1"], params["block2"]
    Cout = b1["conv1_w"].shape[0]
    if has_ds:
        # subsampled full-res positions must lie on the input lattice (true for "same" convs)
        assert stride * (Ho - 1) <= H - 1 and stride * (Wo - 1) <= W - 1
    else:
        assert Cin == Cout, "identity residual needs in_planes == out_planes when stride == 1"
        assert (Ho, Wo) == (H, W), "identity residual needs matching spatial dims"

    # Pack nb images per grid step -> lane dim nb*P_out >= 128 (lane-dense stores).
    nb = min(N, max(1, (128 + P_out - 1) // P_out))
    while N % nb:
        nb -= 1
    G = N // nb
    Pi, Po = nb * P_in, nb * P_out

    # Channel padding to a sublane multiple (aligned concats, fuller MXU rows).
    Cin_p, Cout_p = _round_up(Cin, 8), _round_up(Cout, 8)

    # BN folded into conv weights, fused-K layout.
    w11, bi11 = _fold_bn_fused(b1["conv1_w"], b1["bn1"], Cin_p, Cout_p, cdt)
    w12, bi12 = _fold_bn_fused(b1["conv2_w"], b1["bn2"], Cout_p, Cout_p, cdt)
    w21, bi21 = _fold_bn_fused(b2["conv1_w"], b2["bn1"], Cout_p, Cout_p, cdt)
    w22, bi22 = _fold_bn_fused(b2["conv2_w"], b2["bn2"], Cout_p, Cout_p, cdt)

    shifts_out, mask_out_np = _tap_shifts_masks(Ho, Wo, ksize, padding, nb)
    mask_out = jnp.asarray(mask_out_np)
    roll_out = tuple((-d) % Po for d in shifts_out)
    roll_full = roll_out

    # Input layout: (G, Cin_p, nb*P_in) -- channels on sublanes, batch-packed spatial on lanes.
    x2 = x_nchw.reshape(N, Cin, P_in)
    if Cin_p > Cin:
        x2 = jnp.pad(x2, ((0, 0), (0, Cin_p - Cin), (0, 0)))
    x2 = x2.reshape(G, nb, Cin_p, P_in).transpose((0, 2, 1, 3)).reshape(G, Cin_p, Pi)
    x2 = x2.astype(jnp.float32)

    args = [x2]
    specs = [pl.BlockSpec((1, Cin_p, Pi), lambda g: (g, 0, 0))]
    if has_ds:
        shifts_full, mask_full_np = _tap_shifts_masks(H, W, ksize, padding, nb)
        roll_full = tuple((-d) % Pi for d in shifts_full)
        S = jnp.asarray(_subsample_matrix(H, W, Ho, Wo, stride, nb)).astype(cdt)
        wd, bid = _fold_bn_fused(b1["ds_w"], b1["ds_bn"], Cin_p, Cout_p, cdt)
        args += [jnp.asarray(mask_full_np), mask_out, S, w11, bi11, wd, bid]
    else:
        args += [mask_out, w11, bi11]
    args += [w12, bi12, w21, bi21, w22, bi22]
    specs += [_const_spec(a) for a in args[1:]]

    out = pl.pallas_call(
        _make_encoder_kernel(has_ds, taps, roll_full, roll_out, cdt),
        out_shape=jax.ShapeDtypeStruct((G, Cout_p, Po), jnp.float32),
        grid=(G,),
        in_specs=specs,
        out_specs=pl.BlockSpec((1, Cout_p, Po), lambda g: (g, 0, 0)),
        compiler_params=pltpu.CompilerParams(dimension_semantics=("parallel",)),
    )(*args)

    out = out.reshape(G, Cout_p, nb, P_out).transpose((0, 2, 1, 3))
    return out.reshape(N, Cout_p, Ho, Wo)[:, :Cout]


# ----------------------------------------------------------------------------
# Pure-JAX reference (sanity check against the Pallas path)
# ----------------------------------------------------------------------------
def _conv_ref(x_nhwc, w_oihw, stride, padding):
    w_hwio = jnp.transpose(w_oihw, (2, 3, 1, 0))
    return jax.lax.conv_general_dilated(
        x_nhwc, w_hwio, window_strides=(stride, stride),
        padding=[(padding, padding), (padding, padding)],
        dimension_numbers=("NHWC", "HWIO", "NHWC"))


def _bn_ref(x_nhwc, bn):
    scale = bn["gamma"] / jnp.sqrt(bn["var"] + BN_EPS)
    bias = bn["beta"] - bn["mean"] * scale
    return x_nhwc * scale + bias


def _basic_block_ref(x, p, stride, padding):
    out = jax.nn.relu(_bn_ref(_conv_ref(x, p["conv1_w"], stride, padding), p["bn1"]))
    residual = x
    if stride > 1:
        residual = _bn_ref(_conv_ref(x, p["ds_w"], stride, 0), p["ds_bn"])
    out = _bn_ref(_conv_ref(out, p["conv2_w"], 1, padding), p["bn2"]) + residual
    return jax.nn.relu(out)


def _encoder_ref(x_nchw, params, stride, padding):
    x = jnp.transpose(x_nchw, (0, 2, 3, 1))
    x = _basic_block_ref(x, params["block1"], stride, padding)
    x = _basic_block_ref(x, params["block2"], 1, padding)
    return jnp.transpose(x, (0, 3, 1, 2))


# ----------------------------------------------------------------------------
# Deterministic parameter initialization
# ----------------------------------------------------------------------------
def _init_bn(key, c):
    k1, k2, k3, k4 = jax.random.split(key, 4)
    return dict(
        gamma=1.0 + 0.1 * jax.random.normal(k1, (c,), jnp.float32),
        beta=0.1 * jax.random.normal(k2, (c,), jnp.float32),
        mean=0.1 * jax.random.normal(k3, (c,), jnp.float32),
        var=1.0 + 0.1 * jax.random.uniform(k4, (c,), jnp.float32),
    )


def _init_basic_block(key, in_planes, out_planes, ksize, stride):
    keys = jax.random.split(key, 6)
    p = dict(
        conv1_w=0.1 * jax.random.normal(keys[0], (out_planes, in_planes, ksize, ksize), jnp.float32),
        bn1=_init_bn(keys[1], out_planes),
        conv2_w=0.1 * jax.random.normal(keys[2], (out_planes, out_planes, ksize, ksize), jnp.float32),
        bn2=_init_bn(keys[3], out_planes),
    )
    if stride > 1:
        p["ds_w"] = 0.1 * jax.random.normal(keys[4], (out_planes, in_planes, 1, 1), jnp.float32)
        p["ds_bn"] = _init_bn(keys[5], out_planes)
    return p


def init_encoder(key, in_planes, out_planes, ksize, stride):
    k1, k2 = jax.random.split(key)
    return dict(
        block1=_init_basic_block(k1, in_planes, out_planes, ksize, stride),
        block2=_init_basic_block(k2, out_planes, out_planes, ksize, 1),
    )


# ----------------------------------------------------------------------------
if __name__ == "__main__":
    # Encoder(in_planes=4, out_planes=8, kernel_size=3, stride=2, padding=1)
    in_planes, out_planes, ksize, stride, padding = 4, 8, 3, 2, 1
    batch, H, W = 2, 16, 16

    key = jax.random.PRNGKey(0)
    k_x, k_p = jax.random.split(key)
    x = jax.random.normal(k_x, (batch, in_planes, H, W), jnp.float32)  # NCHW input
    params = init_encoder(k_p, in_planes, out_planes, ksize, stride)

    ref = _encoder_ref(x, params, stride, padding)
    assert ref.shape == (batch, out_planes, H // stride, W // stride)

    # f32 compute path (tight correctness check)
    fwd32 = jax.jit(functools.partial(encoder_forward, stride=stride,
                                      padding=padding, ksize=ksize,
                                      compute_dtype=jnp.float32))
    out32 = jax.block_until_ready(fwd32(x, params))
    assert out32.shape == ref.shape, out32.shape
    assert jnp.allclose(out32, ref, atol=1e-3, rtol=1e-3), "f32 mismatch vs reference"

    # bf16 MXU path for v6e/v7x (f32 accumulation; bf16-appropriate tolerance)
    fwd16 = jax.jit(functools.partial(encoder_forward, stride=stride,
                                      padding=padding, ksize=ksize,
                                      compute_dtype=jnp.bfloat16))
    out16 = jax.block_until_ready(fwd16(x, params))
    assert out16.shape == ref.shape, out16.shape
    assert jnp.allclose(out16, ref, atol=3e-2, rtol=3e-2), "bf16 mismatch vs reference"

    print("KERNEL_OK")
</pallas_src>

<mosaic_0001>
module attributes {stable_mosaic.version = 11 : i64} {
  func.func @kernel(%arg0: i32, %arg1: memref<1x8x512xf32, #tpu.memory_space<vmem>>, %arg2: memref<9x1x512xf32, #tpu.memory_space<vmem>>, %arg3: memref<9x1x128xf32, #tpu.memory_space<vmem>>, %arg4: memref<512x128xf32, #tpu.memory_space<vmem>>, %arg5: memref<8x72xf32, #tpu.memory_space<vmem>>, %arg6: memref<8x1xf32, #tpu.memory_space<vmem>>, %arg7: memref<8x8xf32, #tpu.memory_space<vmem>>, %arg8: memref<8x1xf32, #tpu.memory_space<vmem>>, %arg9: memref<8x72xf32, #tpu.memory_space<vmem>>, %arg10: memref<8x1xf32, #tpu.memory_space<vmem>>, %arg11: memref<8x72xf32, #tpu.memory_space<vmem>>, %arg12: memref<8x1xf32, #tpu.memory_space<vmem>>, %arg13: memref<8x72xf32, #tpu.memory_space<vmem>>, %arg14: memref<8x1xf32, #tpu.memory_space<vmem>>, %arg15: memref<1x8x128xf32, #tpu.memory_space<vmem>>) attributes {dimension_semantics = [#tpu.dimension_semantics<parallel>], iteration_bounds = array<i64: 1>, scalar_prefetch = 0 : i64, scratch_operands = 0 : i64, tpu.core_type = #tpu.core_type<tc>, window_params = [{transform_indices = @transform_0, window_bounds = array<i64: 1, 8, 512>}, {pipeline_mode = #tpu.pipeline_mode<synchronous>, transform_indices = @transform_1, window_bounds = array<i64: 9, 1, 512>}, {pipeline_mode = #tpu.pipeline_mode<synchronous>, transform_indices = @transform_2, window_bounds = array<i64: 9, 1, 128>}, {pipeline_mode = #tpu.pipeline_mode<synchronous>, transform_indices = @transform_3, window_bounds = array<i64: 512, 128>}, {pipeline_mode = #tpu.pipeline_mode<synchronous>, transform_indices = @transform_4, window_bounds = array<i64: 8, 72>}, {pipeline_mode = #tpu.pipeline_mode<synchronous>, transform_indices = @transform_5, window_bounds = array<i64: 8, 1>}, {pipeline_mode = #tpu.pipeline_mode<synchronous>, transform_indices = @transform_6, window_bounds = array<i64: 8, 8>}, {pipeline_mode = #tpu.pipeline_mode<synchronous>, transform_indices = @transform_7, window_bounds = array<i64: 8, 1>}, {pipeline_mode = #tpu.pipeline_mode<synchronous>, transform_indices = @transform_8, window_bounds = array<i64: 8, 72>}, {pipeline_mode = #tpu.pipeline_mode<synchronous>, transform_indices = @transform_9, window_bounds = array<i64: 8, 1>}, {pipeline_mode = #tpu.pipeline_mode<synchronous>, transform_indices = @transform_10, window_bounds = array<i64: 8, 72>}, {pipeline_mode = #tpu.pipeline_mode<synchronous>, transform_indices = @transform_11, window_bounds = array<i64: 8, 1>}, {pipeline_mode = #tpu.pipeline_mode<synchronous>, transform_indices = @transform_12, window_bounds = array<i64: 8, 72>}, {pipeline_mode = #tpu.pipeline_mode<synchronous>, transform_indices = @transform_13, window_bounds = array<i64: 8, 1>}, {transform_indices = @transform_14, window_bounds = array<i64: 1, 8, 128>}]} {
    %c0 = arith.constant 0 : index
    %c0_0 = arith.constant 0 : index
    %c0_1 = arith.constant 0 : index
    %0 = vector.load %arg1[%c0, %c0_0, %c0_1] : memref<1x8x512xf32, #tpu.memory_space<vmem>>, vector<1x8x512xf32>
    %1 = vector.shape_cast %0 : vector<1x8x512xf32> to vector<8x512xf32>
    %c17_i32 = arith.constant 17 : i32
    %2 = tpu.dynamic_rotate %1 by %c17_i32 dim 1 : vector<8x512xf32>, i32 -> vector<8x512xf32>
    %c0_2 = arith.constant 0 : index
    %c0_3 = arith.constant 0 : index
    %c0_4 = arith.constant 0 : index
    %3 = vector.load %arg2[%c0_2, %c0_3, %c0_4] : memref<9x1x512xf32, #tpu.memory_space<vmem>>, vector<1x1x512xf32>
    %4 = vector.shape_cast %3 : vector<1x1x512xf32> to vector<1x512xf32>
    %5 = vector.broadcast %4 : vector<1x512xf32> to vector<8x512xf32>
    %6 = arith.mulf %2, %5 : vector<8x512xf32>
    %c16_i32 = arith.constant 16 : i32
    %7 = tpu.dynamic_rotate %1 by %c16_i32 dim 1 : vector<8x512xf32>, i32 -> vector<8x512xf32>
    %c1 = arith.constant 1 : index
    %c0_5 = arith.constant 0 : index
    %c0_6 = arith.constant 0 : index
    %8 = vector.load %arg2[%c1, %c0_5, %c0_6] : memref<9x1x512xf32, #tpu.memory_space<vmem>>, vector<1x1x512xf32>
    %9 = vector.shape_cast %8 : vector<1x1x512xf32> to vector<1x512xf32>
    %10 = vector.broadcast %9 : vector<1x512xf32> to vector<8x512xf32>
    %11 = arith.mulf %7, %10 : vector<8x512xf32>
    %c15_i32 = arith.constant 15 : i32
    %12 = tpu.dynamic_rotate %1 by %c15_i32 dim 1 : vector<8x512xf32>, i32 -> vector<8x512xf32>
    %c2 = arith.constant 2 : index
    %c0_7 = arith.constant 0 : index
    %c0_8 = arith.constant 0 : index
    %13 = vector.load %arg2[%c2, %c0_7, %c0_8] : memref<9x1x512xf32, #tpu.memory_space<vmem>>, vector<1x1x512xf32>
    %14 = vector.shape_cast %13 : vector<1x1x512xf32> to vector<1x512xf32>
    %15 = vector.broadcast %14 : vector<1x512xf32> to vector<8x512xf32>
    %16 = arith.mulf %12, %15 : vector<8x512xf32>
    %c1_i32 = arith.constant 1 : i32
    %17 = tpu.dynamic_rotate %1 by %c1_i32 dim 1 : vector<8x512xf32>, i32 -> vector<8x512xf32>
    %c3 = arith.constant 3 : index
    %c0_9 = arith.constant 0 : index
    %c0_10 = arith.constant 0 : index
    %18 = vector.load %arg2[%c3, %c0_9, %c0_10] : memref<9x1x512xf32, #tpu.memory_space<vmem>>, vector<1x1x512xf32>
    %19 = vector.shape_cast %18 : vector<1x1x512xf32> to vector<1x512xf32>
    %20 = vector.broadcast %19 : vector<1x512xf32> to vector<8x512xf32>
    %21 = arith.mulf %17, %20 : vector<8x512xf32>
    %c4 = arith.constant 4 : index
    %c0_11 = arith.constant 0 : index
    %c0_12 = arith.constant 0 : index
    %22 = vector.load %arg2[%c4, %c0_11, %c0_12] : memref<9x1x512xf32, #tpu.memory_space<vmem>>, vector<1x1x512xf32>
    %23 = vector.shape_cast %22 : vector<1x1x512xf32> to vector<1x512xf32>
    %24 = vector.broadcast %23 : vector<1x512xf32> to vector<8x512xf32>
    %25 = arith.mulf %1, %24 : vector<8x512xf32>
    %c511_i32 = arith.constant 511 : i32
    %26 = tpu.dynamic_rotate %1 by %c511_i32 dim 1 : vector<8x512xf32>, i32 -> vector<8x512xf32>
    %c5 = arith.constant 5 : index
    %c0_13 = arith.constant 0 : index
    %c0_14 = arith.constant 0 : index
    %27 = vector.load %arg2[%c5, %c0_13, %c0_14] : memref<9x1x512xf32, #tpu.memory_space<vmem>>, vector<1x1x512xf32>
    %28 = vector.shape_cast %27 : vector<1x1x512xf32> to vector<1x512xf32>
    %29 = vector.broadcast %28 : vector<1x512xf32> to vector<8x512xf32>
    %30 = arith.mulf %26, %29 : vector<8x512xf32>
    %c497_i32 = arith.constant 497 : i32
    %31 = tpu.dynamic_rotate %1 by %c497_i32 dim 1 : vector<8x512xf32>, i32 -> vector<8x512xf32>
    %c6 = arith.constant 6 : index
    %c0_15 = arith.constant 0 : index
    %c0_16 = arith.constant 0 : index
    %32 = vector.load %arg2[%c6, %c0_15, %c0_16] : memref<9x1x512xf32, #tpu.memory_space<vmem>>, vector<1x1x512xf32>
    %33 = vector.shape_cast %32 : vector<1x1x512xf32> to vector<1x512xf32>
    %34 = vector.broadcast %33 : vector<1x512xf32> to vector<8x512xf32>
    %35 = arith.mulf %31, %34 : vector<8x512xf32>
    %c496_i32 = arith.constant 496 : i32
    %36 = tpu.dynamic_rotate %1 by %c496_i32 dim 1 : vector<8x512xf32>, i32 -> vector<8x512xf32>
    %c7 = arith.constant 7 : index
    %c0_17 = arith.constant 0 : index
    %c0_18 = arith.constant 0 : index
    %37 = vector.load %arg2[%c7, %c0_17, %c0_18] : memref<9x1x512xf32, #tpu.memory_space<vmem>>, vector<1x1x512xf32>
    %38 = vector.shape_cast %37 : vector<1x1x512xf32> to vector<1x512xf32>
    %39 = vector.broadcast %38 : vector<1x512xf32> to vector<8x512xf32>
    %40 = arith.mulf %36, %39 : vector<8x512xf32>
    %c495_i32 = arith.constant 495 : i32
    %41 = tpu.dynamic_rotate %1 by %c495_i32 dim 1 : vector<8x512xf32>, i32 -> vector<8x512xf32>
    %c8 = arith.constant 8 : index
    %c0_19 = arith.constant 0 : index
    %c0_20 = arith.constant 0 : index
    %42 = vector.load %arg2[%c8, %c0_19, %c0_20] : memref<9x1x512xf32, #tpu.memory_space<vmem>>, vector<1x1x512xf32>
    %43 = vector.shape_cast %42 : vector<1x1x512xf32> to vector<1x512xf32>
    %44 = vector.broadcast %43 : vector<1x512xf32> to vector<8x512xf32>
    %45 = arith.mulf %41, %44 : vector<8x512xf32>
    %46 = tpu.concatenate %6, %11, %16, %21, %25, %30, %35, %40, %45 in 0 : vector<8x512xf32>, vector<8x512xf32>, vector<8x512xf32>, vector<8x512xf32>, vector<8x512xf32>, vector<8x512xf32>, vector<8x512xf32>, vector<8x512xf32>, vector<8x512xf32> -> vector<72x512xf32>
    %c0_21 = arith.constant 0 : index
    %c0_22 = arith.constant 0 : index
    %47 = vector.load %arg5[%c0_21, %c0_22] : memref<8x72xf32, #tpu.memory_space<vmem>>, vector<8x72xf32>
    %cst = arith.constant dense<0.000000e+00> : vector<8x512xf32>
    %48 = tpu.matmul %47, %46, %cst {dimension_numbers = #tpu.dot_dimension_numbers<[1], [0], [0], [1], [0, 0, 1, 1], [], []>} : vector<8x72xf32>, vector<72x512xf32>, vector<8x512xf32> -> vector<8x512xf32>
    %c0_23 = arith.constant 0 : index
    %c0_24 = arith.constant 0 : index
    %49 = vector.load %arg4[%c0_23, %c0_24] : memref<512x128xf32, #tpu.memory_space<vmem>>, vector<512x128xf32>
    %cst_25 = arith.constant dense<0.000000e+00> : vector<8x128xf32>
    %50 = tpu.matmul %48, %49, %cst_25 {dimension_numbers = #tpu.dot_dimension_numbers<[1], [0], [0], [1], [0, 0, 1, 1], [], []>} : vector<8x512xf32>, vector<512x128xf32>, vector<8x128xf32> -> vector<8x128xf32>
    %c0_26 = arith.constant 0 : index
    %c0_27 = arith.constant 0 : index
    %51 = vector.load %arg6[%c0_26, %c0_27] : memref<8x1xf32, #tpu.memory_space<vmem>>, vector<8x1xf32>
    %52 = vector.broadcast %51 : vector<8x1xf32> to vector<8x128xf32>
    %53 = arith.addf %50, %52 : vector<8x128xf32>
    %cst_28 = arith.constant 0.000000e+00 : f32
    %54 = vector.broadcast %cst_28 : f32 to vector<8x128xf32>
    %55 = arith.maximumf %53, %54 : vector<8x128xf32>
    %c0_29 = arith.constant 0 : index
    %c0_30 = arith.constant 0 : index
    %56 = vector.load %arg4[%c0_29, %c0_30] : memref<512x128xf32, #tpu.memory_space<vmem>>, vector<512x128xf32>
    %cst_31 = arith.constant dense<0.000000e+00> : vector<8x128xf32>
    %57 = tpu.matmul %1, %56, %cst_31 {dimension_numbers = #tpu.dot_dimension_numbers<[1], [0], [0], [1], [0, 0, 1, 1], [], []>} : vector<8x512xf32>, vector<512x128xf32>, vector<8x128xf32> -> vector<8x128xf32>
    %c0_32 = arith.constant 0 : index
    %c0_33 = arith.constant 0 : index
    %58 = vector.load %arg7[%c0_32, %c0_33] : memref<8x8xf32, #tpu.memory_space<vmem>>, vector<8x8xf32>
    %cst_34 = arith.constant dense<0.000000e+00> : vector<8x128xf32>
    %59 = tpu.matmul %58, %57, %cst_34 {dimension_numbers = #tpu.dot_dimension_numbers<[1], [0], [0], [1], [0, 0, 1, 1], [], []>} : vector<8x8xf32>, vector<8x128xf32>, vector<8x128xf32> -> vector<8x128xf32>
    %c0_35 = arith.constant 0 : index
    %c0_36 = arith.constant 0 : index
    %60 = vector.load %arg8[%c0_35, %c0_36] : memref<8x1xf32, #tpu.memory_space<vmem>>, vector<8x1xf32>
    %61 = vector.broadcast %60 : vector<8x1xf32> to vector<8x128xf32>
    %62 = arith.addf %59, %61 : vector<8x128xf32>
    %c9_i32 = arith.constant 9 : i32
    %63 = tpu.dynamic_rotate %55 by %c9_i32 dim 1 : vector<8x128xf32>, i32 -> vector<8x128xf32>
    %c0_37 = arith.constant 0 : index
    %c0_38 = arith.constant 0 : index
    %c0_39 = arith.constant 0 : index
    %64 = vector.load %arg3[%c0_37, %c0_38, %c0_39] : memref<9x1x128xf32, #tpu.memory_space<vmem>>, vector<1x1x128xf32>
    %65 = vector.shape_cast %64 : vector<1x1x128xf32> to vector<1x128xf32>
    %66 = vector.broadcast %65 : vector<1x128xf32> to vector<8x128xf32>
    %67 = arith.mulf %63, %66 : vector<8x128xf32>
    %c8_i32 = arith.constant 8 : i32
    %68 = tpu.dynamic_rotate %55 by %c8_i32 dim 1 : vector<8x128xf32>, i32 -> vector<8x128xf32>
    %c1_40 = arith.constant 1 : index
    %c0_41 = arith.constant 0 : index
    %c0_42 = arith.constant 0 : index
    %69 = vector.load %arg3[%c1_40, %c0_41, %c0_42] : memref<9x1x128xf32, #tpu.memory_space<vmem>>, vector<1x1x128xf32>
    %70 = vector.shape_cast %69 : vector<1x1x128xf32> to vector<1x128xf32>
    %71 = vector.broadcast %70 : vector<1x128xf32> to vector<8x128xf32>
    %72 = arith.mulf %68, %71 : vector<8x128xf32>
    %c7_i32 = arith.constant 7 : i32
    %73 = tpu.dynamic_rotate %55 by %c7_i32 dim 1 : vector<8x128xf32>, i32 -> vector<8x128xf32>
    %c2_43 = arith.constant 2 : index
    %c0_44 = arith.constant 0 : index
    %c0_45 = arith.constant 0 : index
    %74 = vector.load %arg3[%c2_43, %c0_44, %c0_45] : memref<9x1x128xf32, #tpu.memory_space<vmem>>, vector<1x1x128xf32>
    %75 = vector.shape_cast %74 : vector<1x1x128xf32> to vector<1x128xf32>
    %76 = vector.broadcast %75 : vector<1x128xf32> to vector<8x128xf32>
    %77 = arith.mulf %73, %76 : vector<8x128xf32>
    %c1_i32_46 = arith.constant 1 : i32
    %78 = tpu.dynamic_rotate %55 by %c1_i32_46 dim 1 : vector<8x128xf32>, i32 -> vector<8x128xf32>
    %c3_47 = arith.constant 3 : index
    %c0_48 = arith.constant 0 : index
    %c0_49 = arith.constant 0 : index
    %79 = vector.load %arg3[%c3_47, %c0_48, %c0_49] : memref<9x1x128xf32, #tpu.memory_space<vmem>>, vector<1x1x128xf32>
    %80 = vector.shape_cast %79 : vector<1x1x128xf32> to vector<1x128xf32>
    %81 = vector.broadcast %80 : vector<1x128xf32> to vector<8x128xf32>
    %82 = arith.mulf %78, %81 : vector<8x128xf32>
    %c4_50 = arith.constant 4 : index
    %c0_51 = arith.constant 0 : index
    %c0_52 = arith.constant 0 : index
    %83 = vector.load %arg3[%c4_50, %c0_51, %c0_52] : memref<9x1x128xf32, #tpu.memory_space<vmem>>, vector<1x1x128xf32>
    %84 = vector.shape_cast %83 : vector<1x1x128xf32> to vector<1x128xf32>
    %85 = vector.broadcast %84 : vector<1x128xf32> to vector<8x128xf32>
    %86 = arith.mulf %55, %85 : vector<8x128xf32>
    %c127_i32 = arith.constant 127 : i32
    %87 = tpu.dynamic_rotate %55 by %c127_i32 dim 1 : vector<8x128xf32>, i32 -> vector<8x128xf32>
    %c5_53 = arith.constant 5 : index
    %c0_54 = arith.constant 0 : index
    %c0_55 = arith.constant 0 : index
    %88 = vector.load %arg3[%c5_53, %c0_54, %c0_55] : memref<9x1x128xf32, #tpu.memory_space<vmem>>, vector<1x1x128xf32>
    %89 = vector.shape_cast %88 : vector<1x1x128xf32> to vector<1x128xf32>
    %90 = vector.broadcast %89 : vector<1x128xf32> to vector<8x128xf32>
    %91 = arith.mulf %87, %90 : vector<8x128xf32>
    %c121_i32 = arith.constant 121 : i32
    %92 = tpu.dynamic_rotate %55 by %c121_i32 dim 1 : vector<8x128xf32>, i32 -> vector<8x128xf32>
    %c6_56 = arith.constant 6 : index
    %c0_57 = arith.constant 0 : index
    %c0_58 = arith.constant 0 : index
    %93 = vector.load %arg3[%c6_56, %c0_57, %c0_58] : memref<9x1x128xf32, #tpu.memory_space<vmem>>, vector<1x1x128xf32>
    %94 = vector.shape_cast %93 : vector<1x1x128xf32> to vector<1x128xf32>
    %95 = vector.broadcast %94 : vector<1x128xf32> to vector<8x128xf32>
    %96 = arith.mulf %92, %95 : vector<8x128xf32>
    %c120_i32 = arith.constant 120 : i32
    %97 = tpu.dynamic_rotate %55 by %c120_i32 dim 1 : vector<8x128xf32>, i32 -> vector<8x128xf32>
    %c7_59 = arith.constant 7 : index
    %c0_60 = arith.constant 0 : index
    %c0_61 = arith.constant 0 : index
    %98 = vector.load %arg3[%c7_59, %c0_60, %c0_61] : memref<9x1x128xf32, #tpu.memory_space<vmem>>, vector<1x1x128xf32>
    %99 = vector.shape_cast %98 : vector<1x1x128xf32> to vector<1x128xf32>
    %100 = vector.broadcast %99 : vector<1x128xf32> to vector<8x128xf32>
    %101 = arith.mulf %97, %100 : vector<8x128xf32>
    %c119_i32 = arith.constant 119 : i32
    %102 = tpu.dynamic_rotate %55 by %c119_i32 dim 1 : vector<8x128xf32>, i32 -> vector<8x128xf32>
    %c8_62 = arith.constant 8 : index
    %c0_63 = arith.constant 0 : index
    %c0_64 = arith.constant 0 : index
    %103 = vector.load %arg3[%c8_62, %c0_63, %c0_64] : memref<9x1x128xf32, #tpu.memory_space<vmem>>, vector<1x1x128xf32>
    %104 = vector.shape_cast %103 : vector<1x1x128xf32> to vector<1x128xf32>
    %105 = vector.broadcast %104 : vector<1x128xf32> to vector<8x128xf32>
    %106 = arith.mulf %102, %105 : vector<8x128xf32>
    %107 = tpu.concatenate %67, %72, %77, %82, %86, %91, %96, %101, %106 in 0 : vector<8x128xf32>, vector<8x128xf32>, vector<8x128xf32>, vector<8x128xf32>, vector<8x128xf32>, vector<8x128xf32>, vector<8x128xf32>, vector<8x128xf32>, vector<8x128xf32> -> vector<72x128xf32>
    %c0_65 = arith.constant 0 : index
    %c0_66 = arith.constant 0 : index
    %108 = vector.load %arg9[%c0_65, %c0_66] : memref<8x72xf32, #tpu.memory_space<vmem>>, vector<8x72xf32>
    %cst_67 = arith.constant dense<0.000000e+00> : vector<8x128xf32>
    %109 = tpu.matmul %108, %107, %cst_67 {dimension_numbers = #tpu.dot_dimension_numbers<[1], [0], [0], [1], [0, 0, 1, 1], [], []>} : vector<8x72xf32>, vector<72x128xf32>, vector<8x128xf32> -> vector<8x128xf32>
    %c0_68 = arith.constant 0 : index
    %c0_69 = arith.constant 0 : index
    %110 = vector.load %arg10[%c0_68, %c0_69] : memref<8x1xf32, #tpu.memory_space<vmem>>, vector<8x1xf32>
    %111 = vector.broadcast %110 : vector<8x1xf32> to vector<8x128xf32>
    %112 = arith.addf %109, %111 : vector<8x128xf32>
    %113 = arith.addf %112, %62 : vector<8x128xf32>
    %cst_70 = arith.constant 0.000000e+00 : f32
    %114 = vector.broadcast %cst_70 : f32 to vector<8x128xf32>
    %115 = arith.maximumf %113, %114 : vector<8x128xf32>
    %c9_i32_71 = arith.constant 9 : i32
    %116 = tpu.dynamic_rotate %115 by %c9_i32_71 dim 1 : vector<8x128xf32>, i32 -> vector<8x128xf32>
    %c0_72 = arith.constant 0 : index
    %c0_73 = arith.constant 0 : index
    %c0_74 = arith.constant 0 : index
    %117 = vector.load %arg3[%c0_72, %c0_73, %c0_74] : memref<9x1x128xf32, #tpu.memory_space<vmem>>, vector<1x1x128xf32>
    %118 = vector.shape_cast %117 : vector<1x1x128xf32> to vector<1x128xf32>
    %119 = vector.broadcast %118 : vector<1x128xf32> to vector<8x128xf32>
    %120 = arith.mulf %116, %119 : vector<8x128xf32>
    %c8_i32_75 = arith.constant 8 : i32
    %121 = tpu.dynamic_rotate %115 by %c8_i32_75 dim 1 : vector<8x128xf32>, i32 -> vector<8x128xf32>
    %c1_76 = arith.constant 1 : index
    %c0_77 = arith.constant 0 : index
    %c0_78 = arith.constant 0 : index
    %122 = vector.load %arg3[%c1_76, %c0_77, %c0_78] : memref<9x1x128xf32, #tpu.memory_space<vmem>>, vector<1x1x128xf32>
    %123 = vector.shape_cast %122 : vector<1x1x128xf32> to vector<1x128xf32>
    %124 = vector.broadcast %123 : vector<1x128xf32> to vector<8x128xf32>
    %125 = arith.mulf %121, %124 : vector<8x128xf32>
    %c7_i32_79 = arith.constant 7 : i32
    %126 = tpu.dynamic_rotate %115 by %c7_i32_79 dim 1 : vector<8x128xf32>, i32 -> vector<8x128xf32>
    %c2_80 = arith.constant 2 : index
    %c0_81 = arith.constant 0 : index
    %c0_82 = arith.constant 0 : index
    %127 = vector.load %arg3[%c2_80, %c0_81, %c0_82] : memref<9x1x128xf32, #tpu.memory_space<vmem>>, vector<1x1x128xf32>
    %128 = vector.shape_cast %127 : vector<1x1x128xf32> to vector<1x128xf32>
    %129 = vector.broadcast %128 : vector<1x128xf32> to vector<8x128xf32>
    %130 = arith.mulf %126, %129 : vector<8x128xf32>
    %c1_i32_83 = arith.constant 1 : i32
    %131 = tpu.dynamic_rotate %115 by %c1_i32_83 dim 1 : vector<8x128xf32>, i32 -> vector<8x128xf32>
    %c3_84 = arith.constant 3 : index
    %c0_85 = arith.constant 0 : index
    %c0_86 = arith.constant 0 : index
    %132 = vector.load %arg3[%c3_84, %c0_85, %c0_86] : memref<9x1x128xf32, #tpu.memory_space<vmem>>, vector<1x1x128xf32>
    %133 = vector.shape_cast %132 : vector<1x1x128xf32> to vector<1x128xf32>
    %134 = vector.broadcast %133 : vector<1x128xf32> to vector<8x128xf32>
    %135 = arith.mulf %131, %134 : vector<8x128xf32>
    %c4_87 = arith.constant 4 : index
    %c0_88 = arith.constant 0 : index
    %c0_89 = arith.constant 0 : index
    %136 = vector.load %arg3[%c4_87, %c0_88, %c0_89] : memref<9x1x128xf32, #tpu.memory_space<vmem>>, vector<1x1x128xf32>
    %137 = vector.shape_cast %136 : vector<1x1x128xf32> to vector<1x128xf32>
    %138 = vector.broadcast %137 : vector<1x128xf32> to vector<8x128xf32>
    %139 = arith.mulf %115, %138 : vector<8x128xf32>
    %c127_i32_90 = arith.constant 127 : i32
    %140 = tpu.dynamic_rotate %115 by %c127_i32_90 dim 1 : vector<8x128xf32>, i32 -> vector<8x128xf32>
    %c5_91 = arith.constant 5 : index
    %c0_92 = arith.constant 0 : index
    %c0_93 = arith.constant 0 : index
    %141 = vector.load %arg3[%c5_91, %c0_92, %c0_93] : memref<9x1x128xf32, #tpu.memory_space<vmem>>, vector<1x1x128xf32>
    %142 = vector.shape_cast %141 : vector<1x1x128xf32> to vector<1x128xf32>
    %143 = vector.broadcast %142 : vector<1x128xf32> to vector<8x128xf32>
    %144 = arith.mulf %140, %143 : vector<8x128xf32>
    %c121_i32_94 = arith.constant 121 : i32
    %145 = tpu.dynamic_rotate %115 by %c121_i32_94 dim 1 : vector<8x128xf32>, i32 -> vector<8x128xf32>
    %c6_95 = arith.constant 6 : index
    %c0_96 = arith.constant 0 : index
    %c0_97 = arith.constant 0 : index
    %146 = vector.load %arg3[%c6_95, %c0_96, %c0_97] : memref<9x1x128xf32, #tpu.memory_space<vmem>>, vector<1x1x128xf32>
    %147 = vector.shape_cast %146 : vector<1x1x128xf32> to vector<1x128xf32>
    %148 = vector.broadcast %147 : vector<1x128xf32> to vector<8x128xf32>
    %149 = arith.mulf %145, %148 : vector<8x128xf32>
    %c120_i32_98 = arith.constant 120 : i32
    %150 = tpu.dynamic_rotate %115 by %c120_i32_98 dim 1 : vector<8x128xf32>, i32 -> vector<8x128xf32>
    %c7_99 = arith.constant 7 : index
    %c0_100 = arith.constant 0 : index
    %c0_101 = arith.constant 0 : index
    %151 = vector.load %arg3[%c7_99, %c0_100, %c0_101] : memref<9x1x128xf32, #tpu.memory_space<vmem>>, vector<1x1x128xf32>
    %152 = vector.shape_cast %151 : vector<1x1x128xf32> to vector<1x128xf32>
    %153 = vector.broadcast %152 : vector<1x128xf32> to vector<8x128xf32>
    %154 = arith.mulf %150, %153 : vector<8x128xf32>
    %c119_i32_102 = arith.constant 119 : i32
    %155 = tpu.dynamic_rotate %115 by %c119_i32_102 dim 1 : vector<8x128xf32>, i32 -> vector<8x128xf32>
    %c8_103 = arith.constant 8 : index
    %c0_104 = arith.constant 0 : index
    %c0_105 = arith.constant 0 : index
    %156 = vector.load %arg3[%c8_103, %c0_104, %c0_105] : memref<9x1x128xf32, #tpu.memory_space<vmem>>, vector<1x1x128xf32>
    %157 = vector.shape_cast %156 : vector<1x1x128xf32> to vector<1x128xf32>
    %158 = vector.broadcast %157 : vector<1x128xf32> to vector<8x128xf32>
    %159 = arith.mulf %155, %158 : vector<8x128xf32>
    %160 = tpu.concatenate %120, %125, %130, %135, %139, %144, %149, %154, %159 in 0 : vector<8x128xf32>, vector<8x128xf32>, vector<8x128xf32>, vector<8x128xf32>, vector<8x128xf32>, vector<8x128xf32>, vector<8x128xf32>, vector<8x128xf32>, vector<8x128xf32> -> vector<72x128xf32>
    %c0_106 = arith.constant 0 : index
    %c0_107 = arith.constant 0 : index
    %161 = vector.load %arg11[%c0_106, %c0_107] : memref<8x72xf32, #tpu.memory_space<vmem>>, vector<8x72xf32>
    %cst_108 = arith.constant dense<0.000000e+00> : vector<8x128xf32>
    %162 = tpu.matmul %161, %160, %cst_108 {dimension_numbers = #tpu.dot_dimension_numbers<[1], [0], [0], [1], [0, 0, 1, 1], [], []>} : vector<8x72xf32>, vector<72x128xf32>, vector<8x128xf32> -> vector<8x128xf32>
    %c0_109 = arith.constant 0 : index
    %c0_110 = arith.constant 0 : index
    %163 = vector.load %arg12[%c0_109, %c0_110] : memref<8x1xf32, #tpu.memory_space<vmem>>, vector<8x1xf32>
    %164 = vector.broadcast %163 : vector<8x1xf32> to vector<8x128xf32>
    %165 = arith.addf %162, %164 : vector<8x128xf32>
    %cst_111 = arith.constant 0.000000e+00 : f32
    %166 = vector.broadcast %cst_111 : f32 to vector<8x128xf32>
    %167 = arith.maximumf %165, %166 : vector<8x128xf32>
    %c9_i32_112 = arith.constant 9 : i32
    %168 = tpu.dynamic_rotate %167 by %c9_i32_112 dim 1 : vector<8x128xf32>, i32 -> vector<8x128xf32>
    %c0_113 = arith.constant 0 : index
    %c0_114 = arith.constant 0 : index
    %c0_115 = arith.constant 0 : index
    %169 = vector.load %arg3[%c0_113, %c0_114, %c0_115] : memref<9x1x128xf32, #tpu.memory_space<vmem>>, vector<1x1x128xf32>
    %170 = vector.shape_cast %169 : vector<1x1x128xf32> to vector<1x128xf32>
    %171 = vector.broadcast %170 : vector<1x128xf32> to vector<8x128xf32>
    %172 = arith.mulf %168, %171 : vector<8x128xf32>
    %c8_i32_116 = arith.constant 8 : i32
    %173 = tpu.dynamic_rotate %167 by %c8_i32_116 dim 1 : vector<8x128xf32>, i32 -> vector<8x128xf32>
    %c1_117 = arith.constant 1 : index
    %c0_118 = arith.constant 0 : index
    %c0_119 = arith.constant 0 : index
    %174 = vector.load %arg3[%c1_117, %c0_118, %c0_119] : memref<9x1x128xf32, #tpu.memory_space<vmem>>, vector<1x1x128xf32>
    %175 = vector.shape_cast %174 : vector<1x1x128xf32> to vector<1x128xf32>
    %176 = vector.broadcast %175 : vector<1x128xf32> to vector<8x128xf32>
    %177 = arith.mulf %173, %176 : vector<8x128xf32>
    %c7_i32_120 = arith.constant 7 : i32
    %178 = tpu.dynamic_rotate %167 by %c7_i32_120 dim 1 : vector<8x128xf32>, i32 -> vector<8x128xf32>
    %c2_121 = arith.constant 2 : index
    %c0_122 = arith.constant 0 : index
    %c0_123 = arith.constant 0 : index
    %179 = vector.load %arg3[%c2_121, %c0_122, %c0_123] : memref<9x1x128xf32, #tpu.memory_space<vmem>>, vector<1x1x128xf32>
    %180 = vector.shape_cast %179 : vector<1x1x128xf32> to vector<1x128xf32>
    %181 = vector.broadcast %180 : vector<1x128xf32> to vector<8x128xf32>
    %182 = arith.mulf %178, %181 : vector<8x128xf32>
    %c1_i32_124 = arith.constant 1 : i32
    %183 = tpu.dynamic_rotate %167 by %c1_i32_124 dim 1 : vector<8x128xf32>, i32 -> vector<8x128xf32>
    %c3_125 = arith.constant 3 : index
    %c0_126 = arith.constant 0 : index
    %c0_127 = arith.constant 0 : index
    %184 = vector.load %arg3[%c3_125, %c0_126, %c0_127] : memref<9x1x128xf32, #tpu.memory_space<vmem>>, vector<1x1x128xf32>
    %185 = vector.shape_cast %184 : vector<1x1x128xf32> to vector<1x128xf32>
    %186 = vector.broadcast %185 : vector<1x128xf32> to vector<8x128xf32>
    %187 = arith.mulf %183, %186 : vector<8x128xf32>
    %c4_128 = arith.constant 4 : index
    %c0_129 = arith.constant 0 : index
    %c0_130 = arith.constant 0 : index
    %188 = vector.load %arg3[%c4_128, %c0_129, %c0_130] : memref<9x1x128xf32, #tpu.memory_space<vmem>>, vector<1x1x128xf32>
    %189 = vector.shape_cast %188 : vector<1x1x128xf32> to vector<1x128xf32>
    %190 = vector.broadcast %189 : vector<1x128xf32> to vector<8x128xf32>
    %191 = arith.mulf %167, %190 : vector<8x128xf32>
    %c127_i32_131 = arith.constant 127 : i32
    %192 = tpu.dynamic_rotate %167 by %c127_i32_131 dim 1 : vector<8x128xf32>, i32 -> vector<8x128xf32>
    %c5_132 = arith.constant 5 : index
    %c0_133 = arith.constant 0 : index
    %c0_134 = arith.constant 0 : index
    %193 = vector.load %arg3[%c5_132, %c0_133, %c0_134] : memref<9x1x128xf32, #tpu.memory_space<vmem>>, vector<1x1x128xf32>
    %194 = vector.shape_cast %193 : vector<1x1x128xf32> to vector<1x128xf32>
    %195 = vector.broadcast %194 : vector<1x128xf32> to vector<8x128xf32>
    %196 = arith.mulf %192, %195 : vector<8x128xf32>
    %c121_i32_135 = arith.constant 121 : i32
    %197 = tpu.dynamic_rotate %167 by %c121_i32_135 dim 1 : vector<8x128xf32>, i32 -> vector<8x128xf32>
    %c6_136 = arith.constant 6 : index
    %c0_137 = arith.constant 0 : index
    %c0_138 = arith.constant 0 : index
    %198 = vector.load %arg3[%c6_136, %c0_137, %c0_138] : memref<9x1x128xf32, #tpu.memory_space<vmem>>, vector<1x1x128xf32>
    %199 = vector.shape_cast %198 : vector<1x1x128xf32> to vector<1x128xf32>
    %200 = vector.broadcast %199 : vector<1x128xf32> to vector<8x128xf32>
    %201 = arith.mulf %197, %200 : vector<8x128xf32>
    %c120_i32_139 = arith.constant 120 : i32
    %202 = tpu.dynamic_rotate %167 by %c120_i32_139 dim 1 : vector<8x128xf32>, i32 -> vector<8x128xf32>
    %c7_140 = arith.constant 7 : index
    %c0_141 = arith.constant 0 : index
    %c0_142 = arith.constant 0 : index
    %203 = vector.load %arg3[%c7_140, %c0_141, %c0_142] : memref<9x1x128xf32, #tpu.memory_space<vmem>>, vector<1x1x128xf32>
    %204 = vector.shape_cast %203 : vector<1x1x128xf32> to vector<1x128xf32>
    %205 = vector.broadcast %204 : vector<1x128xf32> to vector<8x128xf32>
    %206 = arith.mulf %202, %205 : vector<8x128xf32>
    %c119_i32_143 = arith.constant 119 : i32
    %207 = tpu.dynamic_rotate %167 by %c119_i32_143 dim 1 : vector<8x128xf32>, i32 -> vector<8x128xf32>
    %c8_144 = arith.constant 8 : index
    %c0_145 = arith.constant 0 : index
    %c0_146 = arith.constant 0 : index
    %208 = vector.load %arg3[%c8_144, %c0_145, %c0_146] : memref<9x1x128xf32, #tpu.memory_space<vmem>>, vector<1x1x128xf32>
    %209 = vector.shape_cast %208 : vector<1x1x128xf32> to vector<1x128xf32>
    %210 = vector.broadcast %209 : vector<1x128xf32> to vector<8x128xf32>
    %211 = arith.mulf %207, %210 : vector<8x128xf32>
    %212 = tpu.concatenate %172, %177, %182, %187, %191, %196, %201, %206, %211 in 0 : vector<8x128xf32>, vector<8x128xf32>, vector<8x128xf32>, vector<8x128xf32>, vector<8x128xf32>, vector<8x128xf32>, vector<8x128xf32>, vector<8x128xf32>, vector<8x128xf32> -> vector<72x128xf32>
    %c0_147 = arith.constant 0 : index
    %c0_148 = arith.constant 0 : index
    %213 = vector.load %arg13[%c0_147, %c0_148] : memref<8x72xf32, #tpu.memory_space<vmem>>, vector<8x72xf32>
    %cst_149 = arith.constant dense<0.000000e+00> : vector<8x128xf32>
    %214 = tpu.matmul %213, %212, %cst_149 {dimension_numbers = #tpu.dot_dimension_numbers<[1], [0], [0], [1], [0, 0, 1, 1], [], []>} : vector<8x72xf32>, vector<72x128xf32>, vector<8x128xf32> -> vector<8x128xf32>
    %c0_150 = arith.constant 0 : index
    %c0_151 = arith.constant 0 : index
    %215 = vector.load %arg14[%c0_150, %c0_151] : memref<8x1xf32, #tpu.memory_space<vmem>>, vector<8x1xf32>
    %216 = vector.broadcast %215 : vector<8x1xf32> to vector<8x128xf32>
    %217 = arith.addf %214, %216 : vector<8x128xf32>
    %218 = arith.addf %217, %115 : vector<8x128xf32>
    %cst_152 = arith.constant 0.000000e+00 : f32
    %219 = vector.broadcast %cst_152 : f32 to vector<8x128xf32>
    %220 = arith.maximumf %218, %219 : vector<8x128xf32>
    %c0_153 = arith.constant 0 : index
    %c0_154 = arith.constant 0 : index
    %c0_155 = arith.constant 0 : index
    %221 = vector.load %arg15[%c0_153, %c0_154, %c0_155] : memref<1x8x128xf32, #tpu.memory_space<vmem>>, vector<1x8x128xf32>
    %222 = vector.shape_cast %221 : vector<1x8x128xf32> to vector<8x128xf32>
    %223 = vector.shape_cast %220 : vector<8x128xf32> to vector<1x8x128xf32>
    tpu.vector_store %arg15[%c0_153, %c0_154, %c0_155], %223 {strides = array<i32>} : memref<1x8x128xf32, #tpu.memory_space<vmem>>, vector<1x8x128xf32>,
    return
  }
  func.func @transform_0(%arg0: i32) -> (i32, i32, i32) {
    %c0_i32 = arith.constant 0 : i32
    %c0_i32_0 = arith.constant 0 : i32
    %c0_i32_1 = arith.constant 0 : i32
    return %arg0, %c0_i32, %c0_i32_0 : i32, i32, i32
  }
  func.func @transform_1(%arg0: i32) -> (i32, i32, i32) {
    %c0_i32 = arith.constant 0 : i32
    %c0_i32_0 = arith.constant 0 : i32
    %c0_i32_1 = arith.constant 0 : i32
    %c0_i32_2 = arith.constant 0 : i32
    return %c0_i32, %c0_i32_0, %c0_i32_1 : i32, i32, i32
  }
  func.func @transform_2(%arg0: i32) -> (i32, i32, i32) {
    %c0_i32 = arith.constant 0 : i32
    %c0_i32_0 = arith.constant 0 : i32
    %c0_i32_1 = arith.constant 0 : i32
    %c0_i32_2 = arith.constant 0 : i32
    return %c0_i32, %c0_i32_0, %c0_i32_1 : i32, i32, i32
  }
  func.func @transform_3(%arg0: i32) -> (i32, i32) {
    %c0_i32 = arith.constant 0 : i32
    %c0_i32_0 = arith.constant 0 : i32
    %c0_i32_1 = arith.constant 0 : i32
    return %c0_i32, %c0_i32_0 : i32, i32
  }
  func.func @transform_4(%arg0: i32) -> (i32, i32) {
    %c0_i32 = arith.constant 0 : i32
    %c0_i32_0 = arith.constant 0 : i32
    %c0_i32_1 = arith.constant 0 : i32
    return %c0_i32, %c0_i32_0 : i32, i32
  }
  func.func @transform_5(%arg0: i32) -> (i32, i32) {
    %c0_i32 = arith.constant 0 : i32
    %c0_i32_0 = arith.constant 0 : i32
    %c0_i32_1 = arith.constant 0 : i32
    return %c0_i32, %c0_i32_0 : i32, i32
  }
  func.func @transform_6(%arg0: i32) -> (i32, i32) {
    %c0_i32 = arith.constant 0 : i32
    %c0_i32_0 = arith.constant 0 : i32
    %c0_i32_1 = arith.constant 0 : i32
    return %c0_i32, %c0_i32_0 : i32, i32
  }
  func.func @transform_7(%arg0: i32) -> (i32, i32) {
    %c0_i32 = arith.constant 0 : i32
    %c0_i32_0 = arith.constant 0 : i32
    %c0_i32_1 = arith.constant 0 : i32
    return %c0_i32, %c0_i32_0 : i32, i32
  }
  func.func @transform_8(%arg0: i32) -> (i32, i32) {
    %c0_i32 = arith.constant 0 : i32
    %c0_i32_0 = arith.constant 0 : i32
    %c0_i32_1 = arith.constant 0 : i32
    return %c0_i32, %c0_i32_0 : i32, i32
  }
  func.func @transform_9(%arg0: i32) -> (i32, i32) {
    %c0_i32 = arith.constant 0 : i32
    %c0_i32_0 = arith.constant 0 : i32
    %c0_i32_1 = arith.constant 0 : i32
    return %c0_i32, %c0_i32_0 : i32, i32
  }
  func.func @transform_10(%arg0: i32) -> (i32, i32) {
    %c0_i32 = arith.constant 0 : i32
    %c0_i32_0 = arith.constant 0 : i32
    %c0_i32_1 = arith.constant 0 : i32
    return %c0_i32, %c0_i32_0 : i32, i32
  }
  func.func @transform_11(%arg0: i32) -> (i32, i32) {
    %c0_i32 = arith.constant 0 : i32
    %c0_i32_0 = arith.constant 0 : i32
    %c0_i32_1 = arith.constant 0 : i32
    return %c0_i32, %c0_i32_0 : i32, i32
  }
  func.func @transform_12(%arg0: i32) -> (i32, i32) {
    %c0_i32 = arith.constant 0 : i32
    %c0_i32_0 = arith.constant 0 : i32
    %c0_i32_1 = arith.constant 0 : i32
    return %c0_i32, %c0_i32_0 : i32, i32
  }
  func.func @transform_13(%arg0: i32) -> (i32, i32) {
    %c0_i32 = arith.constant 0 : i32
    %c0_i32_0 = arith.constant 0 : i32
    %c0_i32_1 = arith.constant 0 : i32
    return %c0_i32, %c0_i32_0 : i32, i32
  }
  func.func @transform_14(%arg0: i32) -> (i32, i32, i32) {
    %c0_i32 = arith.constant 0 : i32
    %c0_i32_0 = arith.constant 0 : i32
    %c0_i32_1 = arith.constant 0 : i32
    return %arg0, %c0_i32, %c0_i32_0 : i32, i32, i32
  }
}

</mosaic_0001>

<llo_original>
// kernel: encoder_forward.1
$region0: #{encoder_forward.1}
  #allocation0 [shape = 'u32[]', space=smem, size = 0x4, offset = 0x4, fixed_abs, tag = 'smem constant byte address 0x4 - core index']
  #allocation1 [shape = 'u32[144,128]{1,0:T(1,128)}', space=vmem, size = 0x12000, scoped, tag = 'internal scratch']
  %s0 = inlined_call_operand.vmem [shape: f32[1,8,512], index: 0, kind: input, shape index: {}]
  %s1 = inlined_call_operand.vmem [shape: f32[9,1,512], index: 1, kind: input, shape index: {}]
  %s2 = inlined_call_operand.vmem [shape: f32[9,1,128], index: 2, kind: input, shape index: {}]
  %s3 = inlined_call_operand.vmem [shape: f32[512,128], index: 3, kind: input, shape index: {}]
  %s4 = inlined_call_operand.vmem [shape: f32[8,72], index: 4, kind: input, shape index: {}]
  %s5 = inlined_call_operand.vmem [shape: f32[8,1], index: 5, kind: input, shape index: {}]
  %s6 = inlined_call_operand.vmem [shape: f32[8,8], index: 6, kind: input, shape index: {}]
  %s7 = inlined_call_operand.vmem [shape: f32[8,1], index: 7, kind: input, shape index: {}]
  %s8 = inlined_call_operand.vmem [shape: f32[8,72], index: 8, kind: input, shape index: {}]
  %s9 = inlined_call_operand.vmem [shape: f32[8,1], index: 9, kind: input, shape index: {}]
  %s10 = inlined_call_operand.vmem [shape: f32[8,72], index: 10, kind: input, shape index: {}]
  %s11 = inlined_call_operand.vmem [shape: f32[8,1], index: 11, kind: input, shape index: {}]
  %s12 = inlined_call_operand.vmem [shape: f32[8,72], index: 12, kind: input, shape index: {}]
  %s13 = inlined_call_operand.vmem [shape: f32[8,1], index: 13, kind: input, shape index: {}]
  %s14 = inlined_call_operand.vmem [shape: f32[1,8,128], index: 14, kind: output, shape index: {}]
  %s15 = sld [smem:[#allocation0]]
  $region66: #{encoder_forward.1} parent=0
    _
  %s17 = ssub.s32 1, %s15
  %s18 = scalar_select 0, %s17, %s15
  // Predicated region
  $region2: #{encoder_forward.1} parent=0 // pred_check
    _
  $region3: #{encoder_forward.1} parent=0 // pred_check_branch
    %20 = sbr.rel (0) target = $region5
  $region4: #{encoder_forward.1} parent=0 // pred_region
    _
  $region5: #{encoder_forward.1} parent=0 // pred_fallthru
    _
  // Predicated region
  $region6: #{encoder_forward.1} parent=0 // pred_check
    _
  $region7: #{encoder_forward.1} parent=0 // pred_check_branch
    %22 = sbr.rel (0) target = $region9
  $region8: #{encoder_forward.1} parent=0 // pred_region
    _
  $region9: #{encoder_forward.1} parent=0 // pred_fallthru
    _
  // Predicated region
  $region10: #{encoder_forward.1} parent=0 // pred_check
    _
  $region11: #{encoder_forward.1} parent=0 // pred_check_branch
    %24 = sbr.rel (0) target = $region13
  $region12: #{encoder_forward.1} parent=0 // pred_region
    _
  $region13: #{encoder_forward.1} parent=0 // pred_fallthru
    _
  // Predicated region
  $region14: #{encoder_forward.1} parent=0 // pred_check
    _
  $region15: #{encoder_forward.1} parent=0 // pred_check_branch
    %26 = sbr.rel (0) target = $region17
  $region16: #{encoder_forward.1} parent=0 // pred_region
    _
  $region17: #{encoder_forward.1} parent=0 // pred_fallthru
    _
  // Predicated region
  $region18: #{encoder_forward.1} parent=0 // pred_check
    _
  $region19: #{encoder_forward.1} parent=0 // pred_check_branch
    %28 = sbr.rel (0) target = $region21
  $region20: #{encoder_forward.1} parent=0 // pred_region
    _
  $region21: #{encoder_forward.1} parent=0 // pred_fallthru
    _
  // Predicated region
  $region22: #{encoder_forward.1} parent=0 // pred_check
    _
  $region23: #{encoder_forward.1} parent=0 // pred_check_branch
    %30 = sbr.rel (0) target = $region25
  $region24: #{encoder_forward.1} parent=0 // pred_region
    _
  $region25: #{encoder_forward.1} parent=0 // pred_fallthru
    _
  // Predicated region
  $region26: #{encoder_forward.1} parent=0 // pred_check
    _
  $region27: #{encoder_forward.1} parent=0 // pred_check_branch
    %32 = sbr.rel (0) target = $region29
  $region28: #{encoder_forward.1} parent=0 // pred_region
    _
  $region29: #{encoder_forward.1} parent=0 // pred_fallthru
    _
  // Predicated region
  $region30: #{encoder_forward.1} parent=0 // pred_check
    _
  $region31: #{encoder_forward.1} parent=0 // pred_check_branch
    %34 = sbr.rel (0) target = $region33
  $region32: #{encoder_forward.1} parent=0 // pred_region
    _
  $region33: #{encoder_forward.1} parent=0 // pred_fallthru
    _
  // Predicated region
  $region34: #{encoder_forward.1} parent=0 // pred_check
    _
  $region35: #{encoder_forward.1} parent=0 // pred_check_branch
    %36 = sbr.rel (0) target = $region37
  $region36: #{encoder_forward.1} parent=0 // pred_region
    _
  $region37: #{encoder_forward.1} parent=0 // pred_fallthru
    _
  // Predicated region
  $region38: #{encoder_forward.1} parent=0 // pred_check
    _
  $region39: #{encoder_forward.1} parent=0 // pred_check_branch
    %38 = sbr.rel (0) target = $region41
  $region40: #{encoder_forward.1} parent=0 // pred_region
    _
  $region41: #{encoder_forward.1} parent=0 // pred_fallthru
    _
  // Predicated region
  $region42: #{encoder_forward.1} parent=0 // pred_check
    _
  $region43: #{encoder_forward.1} parent=0 // pred_check_branch
    %40 = sbr.rel (0) target = $region45
  $region44: #{encoder_forward.1} parent=0 // pred_region
    _
  $region45: #{encoder_forward.1} parent=0 // pred_fallthru
    _
  // Predicated region
  $region46: #{encoder_forward.1} parent=0 // pred_check
    _
  $region47: #{encoder_forward.1} parent=0 // pred_check_branch
    %42 = sbr.rel (0) target = $region49
  $region48: #{encoder_forward.1} parent=0 // pred_region
    _
  $region49: #{encoder_forward.1} parent=0 // pred_fallthru
    _
  // Predicated region
  $region50: #{encoder_forward.1} parent=0 // pred_check
    _
  $region51: #{encoder_forward.1} parent=0 // pred_check_branch
    %44 = sbr.rel (0) target = $region53
  $region52: #{encoder_forward.1} parent=0 // pred_region
    _
  $region53: #{encoder_forward.1} parent=0 // pred_fallthru
    _
  // Predicated region
  $region54: #{encoder_forward.1} parent=0 // pred_check
    _
  $region55: #{encoder_forward.1} parent=0 // pred_check_branch
    %46 = sbr.rel (0) target = $region57
  $region56: #{encoder_forward.1} parent=0 // pred_region
    _
  $region57: #{encoder_forward.1} parent=0 // pred_fallthru
    _
  %v47 = vld [vmem:[%s0] sm:$0xff]
  %v48 = vld [vmem:[%s0 + $0x8] sm:$0xff]
  %v49 = vld [vmem:[%s0 + $0x10] sm:$0xff]
  %v50 = vld [vmem:[%s0 + $0x18] sm:$0xff]
  %51 = vrot.lane.b32.xlu0 %v47, 17
  %v52 = vpop.permute.xlu0 %51
  %53 = vrot.lane.b32.xlu0 %v48, 17
  %v54 = vpop.permute.xlu0 %53
  %55 = vrot.lane.b32.xlu0 %v49, 17
  %v56 = vpop.permute.xlu0 %55
  %57 = vrot.lane.b32.xlu0 %v50, 17
  %v58 = vpop.permute.xlu0 %57
  %v59 = vlaneseq
  %v60 = vand.u32 %v59, 127
  %vm61 = vcmp.lt.s32.totalorder %v60, 17
  %v62 = vsel %vm61, %v56, %v58
  %v63 = vsel %vm61, %v54, %v56
  %v64 = vsel %vm61, %v52, %v54
  %v65 = vsel %vm61, %v58, %v52
  %v66 = vld [vmem:[%s1] sm:$0xf]
  %v68 = vlaneseq
  %v69 = vshrl.u32 %v68, 7
  %v70 = vsub.s32 0, %v69
  %v71 = vrot.slane %v66, %v70
  %v72 = vlaneseq
  %v73 = vshrl.u32 %v72, 7
  %v74 = vsub.s32 1, %v73
  %v75 = vrot.slane %v66, %v74
  %v76 = vlaneseq
  %v77 = vshrl.u32 %v76, 7
  %v78 = vsub.s32 2, %v77
  %v79 = vrot.slane %v66, %v78
  %v80 = vlaneseq
  %v81 = vshrl.u32 %v80, 7
  %v82 = vsub.s32 3, %v81
  %v83 = vrot.slane %v66, %v82
  %v88 = vmul.f32 %v65, %v71
  %v89 = vmul.f32 %v64, %v75
  %v90 = vmul.f32 %v63, %v79
  %v91 = vmul.f32 %v62, %v83
  %92 = vrot.lane.b32.xlu0 %v47, 16
  %v93 = vpop.permute.xlu0 %92
  %94 = vrot.lane.b32.xlu0 %v48, 16
  %v95 = vpop.permute.xlu0 %94
  %96 = vrot.lane.b32.xlu0 %v49, 16
  %v97 = vpop.permute.xlu0 %96
  %98 = vrot.lane.b32.xlu0 %v50, 16
  %v99 = vpop.permute.xlu0 %98
  %vm100 = vcmp.lt.s32.totalorder %v60, 16
  %v101 = vsel %vm100, %v97, %v99
  %v102 = vsel %vm100, %v95, %v97
  %v103 = vsel %vm100, %v93, %v95
  %v104 = vsel %vm100, %v99, %v93
  %s105 = scalar_lea.vmem %s1, 4
  %v106 = vld [vmem:[%s105] sm:$0xf]
  %v108 = vlaneseq
  %v109 = vshrl.u32 %v108, 7
  %v110 = vsub.s32 0, %v109
  %v111 = vrot.slane %v106, %v110
  %v112 = vlaneseq
  %v113 = vshrl.u32 %v112, 7
  %v114 = vsub.s32 1, %v113
  %v115 = vrot.slane %v106, %v114
  %v116 = vlaneseq
  %v117 = vshrl.u32 %v116, 7
  %v118 = vsub.s32 2, %v117
  %v119 = vrot.slane %v106, %v118
  %v120 = vlaneseq
  %v121 = vshrl.u32 %v120, 7
  %v122 = vsub.s32 3, %v121
  %v123 = vrot.slane %v106, %v122
  %v128 = vmul.f32 %v104, %v111
  %v129 = vmul.f32 %v103, %v115
  %v130 = vmul.f32 %v102, %v119
  %v131 = vmul.f32 %v101, %v123
  %132 = vrot.lane.b32.xlu0 %v47, 15
  %v133 = vpop.permute.xlu0 %132
  %134 = vrot.lane.b32.xlu0 %v48, 15
  %v135 = vpop.permute.xlu0 %134
  %136 = vrot.lane.b32.xlu0 %v49, 15
  %v137 = vpop.permute.xlu0 %136
  %138 = vrot.lane.b32.xlu0 %v50, 15
  %v139 = vpop.permute.xlu0 %138
  %vm140 = vcmp.lt.s32.totalorder %v60, 15
  %v141 = vsel %vm140, %v137, %v139
  %v142 = vsel %vm140, %v135, %v137
  %v143 = vsel %vm140, %v133, %v135
  %v144 = vsel %vm140, %v139, %v133
  %s145 = scalar_lea.vmem %s1, 8
  %v146 = vld [vmem:[%s145] sm:$0xf]
  %v148 = vlaneseq
  %v149 = vshrl.u32 %v148, 7
  %v150 = vsub.s32 0, %v149
  %v151 = vrot.slane %v146, %v150
  %v152 = vlaneseq
  %v153 = vshrl.u32 %v152, 7
  %v154 = vsub.s32 1, %v153
  %v155 = vrot.slane %v146, %v154
  %v156 = vlaneseq
  %v157 = vshrl.u32 %v156, 7
  %v158 = vsub.s32 2, %v157
  %v159 = vrot.slane %v146, %v158
  %v160 = vlaneseq
  %v161 = vshrl.u32 %v160, 7
  %v162 = vsub.s32 3, %v161
  %v163 = vrot.slane %v146, %v162
  %v168 = vmul.f32 %v144, %v151
  %v169 = vmul.f32 %v143, %v155
  %v170 = vmul.f32 %v142, %v159
  %v171 = vmul.f32 %v141, %v163
  %172 = vrot.lane.b32.xlu0 %v47, 1
  %v173 = vpop.permute.xlu0 %172
  %174 = vrot.lane.b32.xlu0 %v48, 1
  %v175 = vpop.permute.xlu0 %174
  %176 = vrot.lane.b32.xlu0 %v49, 1
  %v177 = vpop.permute.xlu0 %176
  %178 = vrot.lane.b32.xlu0 %v50, 1
  %v179 = vpop.permute.xlu0 %178
  %vm180 = vcmp.lt.s32.totalorder %v60, 1
  %v181 = vsel %vm180, %v177, %v179
  %v182 = vsel %vm180, %v175, %v177
  %v183 = vsel %vm180, %v173, %v175
  %v184 = vsel %vm180, %v179, %v173
  %s185 = scalar_lea.vmem %s1, 12
  %v186 = vld [vmem:[%s185] sm:$0xf]
  %v188 = vlaneseq
  %v189 = vshrl.u32 %v188, 7
  %v190 = vsub.s32 0, %v189
  %v191 = vrot.slane %v186, %v190
  %v192 = vlaneseq
  %v193 = vshrl.u32 %v192, 7
  %v194 = vsub.s32 1, %v193
  %v195 = vrot.slane %v186, %v194
  %v196 = vlaneseq
  %v197 = vshrl.u32 %v196, 7
  %v198 = vsub.s32 2, %v197
  %v199 = vrot.slane %v186, %v198
  %v200 = vlaneseq
  %v201 = vshrl.u32 %v200, 7
  %v202 = vsub.s32 3, %v201
  %v203 = vrot.slane %v186, %v202
  %v208 = vmul.f32 %v184, %v191
  %v209 = vmul.f32 %v183, %v195
  %v210 = vmul.f32 %v182, %v199
  %v211 = vmul.f32 %v181, %v203
  %s212 = scalar_lea.vmem %s1, 16
  %v213 = vld [vmem:[%s212] sm:$0xf]
  %v215 = vlaneseq
  %v216 = vshrl.u32 %v215, 7
  %v217 = vsub.s32 0, %v216
  %v218 = vrot.slane %v213, %v217
  %v219 = vlaneseq
  %v220 = vshrl.u32 %v219, 7
  %v221 = vsub.s32 1, %v220
  %v222 = vrot.slane %v213, %v221
  %v223 = vlaneseq
  %v224 = vshrl.u32 %v223, 7
  %v225 = vsub.s32 2, %v224
  %v226 = vrot.slane %v213, %v225
  %v227 = vlaneseq
  %v228 = vshrl.u32 %v227, 7
  %v229 = vsub.s32 3, %v228
  %v230 = vrot.slane %v213, %v229
  %v235 = vmul.f32 %v47, %v218
  %v236 = vmul.f32 %v48, %v222
  %v237 = vmul.f32 %v49, %v226
  %v238 = vmul.f32 %v50, %v230
  %239 = vrot.lane.b32.xlu0 %v47, 127
  %v240 = vpop.permute.xlu0 %239
  %241 = vrot.lane.b32.xlu0 %v48, 127
  %v242 = vpop.permute.xlu0 %241
  %243 = vrot.lane.b32.xlu0 %v49, 127
  %v244 = vpop.permute.xlu0 %243
  %245 = vrot.lane.b32.xlu0 %v50, 127
  %v246 = vpop.permute.xlu0 %245
  %vm247 = vcmp.lt.s32.totalorder %v60, 127
  %v248 = vsel %vm247, %v244, %v246
  %v249 = vsel %vm247, %v242, %v244
  %v250 = vsel %vm247, %v240, %v242
  %v251 = vsel %vm247, %v246, %v240
  %s252 = scalar_lea.vmem %s1, 20
  %v253 = vld [vmem:[%s252] sm:$0xf]
  %v255 = vlaneseq
  %v256 = vshrl.u32 %v255, 7
  %v257 = vsub.s32 0, %v256
  %v258 = vrot.slane %v253, %v257
  %v259 = vlaneseq
  %v260 = vshrl.u32 %v259, 7
  %v261 = vsub.s32 1, %v260
  %v262 = vrot.slane %v253, %v261
  %v263 = vlaneseq
  %v264 = vshrl.u32 %v263, 7
  %v265 = vsub.s32 2, %v264
  %v266 = vrot.slane %v253, %v265
  %v267 = vlaneseq
  %v268 = vshrl.u32 %v267, 7
  %v269 = vsub.s32 3, %v268
  %v270 = vrot.slane %v253, %v269
  %v275 = vmul.f32 %v250, %v258
  %v276 = vmul.f32 %v249, %v262
  %v277 = vmul.f32 %v248, %v266
  %v278 = vmul.f32 %v251, %v270
  %279 = vrot.lane.b32.xlu0 %v47, 113
  %v280 = vpop.permute.xlu0 %279
  %281 = vrot.lane.b32.xlu0 %v48, 113
  %v282 = vpop.permute.xlu0 %281
  %283 = vrot.lane.b32.xlu0 %v49, 113
  %v284 = vpop.permute.xlu0 %283
  %285 = vrot.lane.b32.xlu0 %v50, 113
  %v286 = vpop.permute.xlu0 %285
  %vm287 = vcmp.lt.s32.totalorder %v60, 113
  %v288 = vsel %vm287, %v284, %v286
  %v289 = vsel %vm287, %v282, %v284
  %v290 = vsel %vm287, %v280, %v282
  %v291 = vsel %vm287, %v286, %v280
  %s292 = scalar_lea.vmem %s1, 24
  %v293 = vld [vmem:[%s292] sm:$0xf]
  %v295 = vlaneseq
  %v296 = vshrl.u32 %v295, 7
  %v297 = vsub.s32 0, %v296
  %v298 = vrot.slane %v293, %v297
  %v299 = vlaneseq
  %v300 = vshrl.u32 %v299, 7
  %v301 = vsub.s32 1, %v300
  %v302 = vrot.slane %v293, %v301
  %v303 = vlaneseq
  %v304 = vshrl.u32 %v303, 7
  %v305 = vsub.s32 2, %v304
  %v306 = vrot.slane %v293, %v305
  %v307 = vlaneseq
  %v308 = vshrl.u32 %v307, 7
  %v309 = vsub.s32 3, %v308
  %v310 = vrot.slane %v293, %v309
  %v315 = vmul.f32 %v290, %v298
  %v316 = vmul.f32 %v289, %v302
  %v317 = vmul.f32 %v288, %v306
  %v318 = vmul.f32 %v291, %v310
  %319 = vrot.lane.b32.xlu0 %v47, 112
  %v320 = vpop.permute.xlu0 %319
  %321 = vrot.lane.b32.xlu0 %v48, 112
  %v322 = vpop.permute.xlu0 %321
  %323 = vrot.lane.b32.xlu0 %v49, 112
  %v324 = vpop.permute.xlu0 %323
  %325 = vrot.lane.b32.xlu0 %v50, 112
  %v326 = vpop.permute.xlu0 %325
  %vm327 = vcmp.lt.s32.totalorder %v60, 112
  %v328 = vsel %vm327, %v324, %v326
  %v329 = vsel %vm327, %v322, %v324
  %v330 = vsel %vm327, %v320, %v322
  %v331 = vsel %vm327, %v326, %v320
  %s332 = scalar_lea.vmem %s1, 28
  %v333 = vld [vmem:[%s332] sm:$0xf]
  %v335 = vlaneseq
  %v336 = vshrl.u32 %v335, 7
  %v337 = vsub.s32 0, %v336
  %v338 = vrot.slane %v333, %v337
  %v339 = vlaneseq
  %v340 = vshrl.u32 %v339, 7
  %v341 = vsub.s32 1, %v340
  %v342 = vrot.slane %v333, %v341
  %v343 = vlaneseq
  %v344 = vshrl.u32 %v343, 7
  %v345 = vsub.s32 2, %v344
  %v346 = vrot.slane %v333, %v345
  %v347 = vlaneseq
  %v348 = vshrl.u32 %v347, 7
  %v349 = vsub.s32 3, %v348
  %v350 = vrot.slane %v333, %v349
  %v355 = vmul.f32 %v330, %v338
  %v356 = vmul.f32 %v329, %v342
  %v357 = vmul.f32 %v328, %v346
  %v358 = vmul.f32 %v331, %v350
  %359 = vrot.lane.b32.xlu0 %v47, 111
  %v360 = vpop.permute.xlu0 %359
  %361 = vrot.lane.b32.xlu0 %v48, 111
  %v362 = vpop.permute.xlu0 %361
  %363 = vrot.lane.b32.xlu0 %v49, 111
  %v364 = vpop.permute.xlu0 %363
  %365 = vrot.lane.b32.xlu0 %v50, 111
  %v366 = vpop.permute.xlu0 %365
  %vm367 = vcmp.lt.s32.totalorder %v60, 111
  %v368 = vsel %vm367, %v364, %v366
  %v369 = vsel %vm367, %v362, %v364
  %v370 = vsel %vm367, %v360, %v362
  %v371 = vsel %vm367, %v366, %v360
  %s372 = scalar_lea.vmem %s1, 32
  %v373 = vld [vmem:[%s372] sm:$0xf]
  %v375 = vlaneseq
  %v376 = vshrl.u32 %v375, 7
  %v377 = vsub.s32 0, %v376
  %v378 = vrot.slane %v373, %v377
  %v379 = vlaneseq
  %v380 = vshrl.u32 %v379, 7
  %v381 = vsub.s32 1, %v380
  %v382 = vrot.slane %v373, %v381
  %v383 = vlaneseq
  %v384 = vshrl.u32 %v383, 7
  %v385 = vsub.s32 2, %v384
  %v386 = vrot.slane %v373, %v385
  %v387 = vlaneseq
  %v388 = vshrl.u32 %v387, 7
  %v389 = vsub.s32 3, %v388
  %v390 = vrot.slane %v373, %v389
  %v395 = vmul.f32 %v370, %v378
  %v396 = vmul.f32 %v369, %v382
  %v397 = vmul.f32 %v368, %v386
  %v398 = vmul.f32 %v371, %v390
  %v399 = vld [vmem:[%s4] sm:$0xff]
  %vm400 = vcmask 588800
  %v402 = vsel %vm400, %v399, 0
  %404 = vmatprep.subr.mxu0 %v89
  %405 = vmatpush1.msra.mxu0 %v88
  %406 = vmatprep.subr.mxu0 %v129
  %407 = vmatpush1.msra.mxu0 %v128
  %408 = vmatprep.subr.mxu0 %v169
  %409 = vmatpush1.msra.mxu0 %v168
  %410 = vmatprep.subr.mxu0 %v209
  %411 = vmatpush1.msra.mxu0 %v208
  %412 = vmatprep.subr.mxu0 %v236
  %413 = vmatpush1.msra.mxu0 %v235
  %414 = vmatprep.subr.mxu0 %v276
  %415 = vmatpush1.msra.mxu0 %v275
  %416 = vmatprep.subr.mxu0 %v316
  %417 = vmatpush1.msra.mxu0 %v315
  %418 = vmatprep.subr.mxu0 %v356
  %419 = vmatpush1.msra.mxu0 %v355
  %420 = vmatprep.subr.mxu0 %v396
  %421 = vmatpush1.msra.mxu0 %v395
  %422 = vmatprep.subr.mxu0 0.0
  %423 = vmatpush1.msra.mxu0 0.0
  %424 = vmatprep.subr.mxu0 0.0
  %425 = vmatpush1.msra.mxu0 0.0
  %426 = vmatprep.subr.mxu0 0.0
  %427 = vmatpush1.msra.mxu0 0.0
  %428 = vmatprep.subr.mxu0 0.0
  %429 = vmatpush1.msra.mxu0 0.0
  %430 = vmatprep.subr.mxu0 0.0
  %431 = vmatpush1.msra.mxu0 0.0
  %432 = vmatprep.subr.mxu0 0.0
  %433 = vmatpush1.msra.mxu0 0.0
  %434 = vmatprep.subr.mxu0 0.0
  %435 = vmatpush1.msra.mxu0 0.0
  %436 = vmatprep.subr.mxu0 0.0
  %437 = vmatpush1.msra.mxu0 0.0
  %438 = vmatprep.subr.mxu0 0.0
  %439 = vmatpush1.msra.mxu0 0.0
  %440 = vmatprep.subr.mxu0 0.0
  %441 = vmatpush1.msra.mxu0 0.0
  %442 = vmatprep.subr.mxu0 0.0
  %443 = vmatpush1.msra.mxu0 0.0
  %444 = vmatprep.subr.mxu0 0.0
  %445 = vmatpush1.msra.mxu0 0.0
  %446 = vmatprep.subr.mxu0 0.0
  %447 = vmatpush1.msra.mxu0 0.0
  %448 = vmatprep.subr.mxu0 0.0
  %449 = vmatpush1.msra.mxu0 0.0
  %450 = vmatprep.subr.mxu0 0.0
  %451 = vmatpush1.msra.mxu0 0.0
  %452 = vmatprep.subr.mxu0 0.0
  %453 = vmatpush1.msra.mxu0 0.0
  %454 = vmatprep.subr.mxu0 0.0
  %455 = vmatpush1.msra.mxu0 0.0
  %456 = vmatprep.subr.mxu0 0.0
  %457 = vmatpush1.msra.mxu0 0.0
  %458 = vmatprep.subr.mxu0 0.0
  %459 = vmatpush1.msra.mxu0 0.0
  %460 = vmatprep.subr.mxu0 0.0
  %461 = vmatpush1.msra.mxu0 0.0
  %462 = vmatprep.subr.mxu0 0.0
  %463 = vmatpush1.msra.mxu0 0.0
  %464 = vmatprep.subr.mxu0 0.0
  %465 = vmatpush1.msra.mxu0 0.0
  %466 = vmatprep.subr.mxu0 0.0
  %467 = vmatpush1.msra.mxu0 0.0
  %468 = vmatprep.mubr.f32.mxu0 0.0
  %469 = vmatmul.mubr.f32.gmra.mrb[0].mxu0 %v402
  %v470 = vpop.f32.mrb[0].mxu0
  %v471 = vadd.f32 0.0, %v470
  %v472 = vpop.f32.mrb[0].mxu0
  %v473 = vadd.f32 0.0, %v472
  %474 = vdwg.mxu0
  %475 = vmatprep.subr.mxu0 %v91
  %476 = vmatpush1.msra.mxu0 %v90
  %477 = vmatprep.subr.mxu0 %v131
  %478 = vmatpush1.msra.mxu0 %v130
  %479 = vmatprep.subr.mxu0 %v171
  %480 = vmatpush1.msra.mxu0 %v170
  %481 = vmatprep.subr.mxu0 %v211
  %482 = vmatpush1.msra.mxu0 %v210
  %483 = vmatprep.subr.mxu0 %v238
  %484 = vmatpush1.msra.mxu0 %v237
  %485 = vmatprep.subr.mxu0 %v278
  %486 = vmatpush1.msra.mxu0 %v277
  %487 = vmatprep.subr.mxu0 %v318
  %488 = vmatpush1.msra.mxu0 %v317
  %489 = vmatprep.subr.mxu0 %v358
  %490 = vmatpush1.msra.mxu0 %v357
  %491 = vmatprep.subr.mxu0 %v398
  %492 = vmatpush1.msra.mxu0 %v397
  %493 = vmatprep.subr.mxu0 0.0
  %494 = vmatpush1.msra.mxu0 0.0
  %495 = vmatprep.subr.mxu0 0.0
  %496 = vmatpush1.msra.mxu0 0.0
  %497 = vmatprep.subr.mxu0 0.0
  %498 = vmatpush1.msra.mxu0 0.0
  %499 = vmatprep.subr.mxu0 0.0
  %500 = vmatpush1.msra.mxu0 0.0
  %501 = vmatprep.subr.mxu0 0.0
  %502 = vmatpush1.msra.mxu0 0.0
  %503 = vmatprep.subr.mxu0 0.0
  %504 = vmatpush1.msra.mxu0 0.0
  %505 = vmatprep.subr.mxu0 0.0
  %506 = vmatpush1.msra.mxu0 0.0
  %507 = vmatprep.subr.mxu0 0.0
  %508 = vmatpush1.msra.mxu0 0.0
  %509 = vmatprep.subr.mxu0 0.0
  %510 = vmatpush1.msra.mxu0 0.0
  %511 = vmatprep.subr.mxu0 0.0
  %512 = vmatpush1.msra.mxu0 0.0
  %513 = vmatprep.subr.mxu0 0.0
  %514 = vmatpush1.msra.mxu0 0.0
  %515 = vmatprep.subr.mxu0 0.0
  %516 = vmatpush1.msra.mxu0 0.0
  %517 = vmatprep.subr.mxu0 0.0
  %518 = vmatpush1.msra.mxu0 0.0
  %519 = vmatprep.subr.mxu0 0.0
  %520 = vmatpush1.msra.mxu0 0.0
  %521 = vmatprep.subr.mxu0 0.0
  %522 = vmatpush1.msra.mxu0 0.0
  %523 = vmatprep.subr.mxu0 0.0
  %524 = vmatpush1.msra.mxu0 0.0
  %525 = vmatprep.subr.mxu0 0.0
  %526 = vmatpush1.msra.mxu0 0.0
  %527 = vmatprep.subr.mxu0 0.0
  %528 = vmatpush1.msra.mxu0 0.0
  %529 = vmatprep.subr.mxu0 0.0
  %530 = vmatpush1.msra.mxu0 0.0
  %531 = vmatprep.subr.mxu0 0.0
  %532 = vmatpush1.msra.mxu0 0.0
  %533 = vmatprep.subr.mxu0 0.0
  %534 = vmatpush1.msra.mxu0 0.0
  %535 = vmatprep.subr.mxu0 0.0
  %536 = vmatpush1.msra.mxu0 0.0
  %537 = vmatprep.subr.mxu0 0.0
  %538 = vmatpush1.msra.mxu0 0.0
  %539 = vmatprep.mubr.f32.mxu0 0.0
  %540 = vmatmul.mubr.f32.gmra.mrb[0].mxu0 %v402
  %v541 = vpop.f32.mrb[0].mxu0
  %v542 = vadd.f32 0.0, %v541
  %v543 = vpop.f32.mrb[0].mxu0
  %v544 = vadd.f32 0.0, %v543
  %545 = vdwg.mxu0
  %v546 = vld [vmem:[%s3] sm:$0xff]
  %v547 = vld [vmem:[%s3 + $0x8] sm:$0xff]
  %v548 = vld [vmem:[%s3 + $0x10] sm:$0xff]
  %v549 = vld [vmem:[%s3 + $0x18] sm:$0xff]
  %v550 = vld [vmem:[%s3 + $0x20] sm:$0xff]
  %v551 = vld [vmem:[%s3 + $0x28] sm:$0xff]
  %v552 = vld [vmem:[%s3 + $0x30] sm:$0xff]
  %v553 = vld [vmem:[%s3 + $0x38] sm:$0xff]
  %v554 = vld [vmem:[%s3 + $0x40] sm:$0xff]
  %v555 = vld [vmem:[%s3 + $0x48] sm:$0xff]
  %v556 = vld [vmem:[%s3 + $0x50] sm:$0xff]
  %v557 = vld [vmem:[%s3 + $0x58] sm:$0xff]
  %v558 = vld [vmem:[%s3 + $0x60] sm:$0xff]
  %v559 = vld [vmem:[%s3 + $0x68] sm:$0xff]
  %v560 = vld [vmem:[%s3 + $0x70] sm:$0xff]
  %v561 = vld [vmem:[%s3 + $0x78] sm:$0xff]
  %v562 = vld [vmem:[%s3 + $0x80] sm:$0xff]
  %v563 = vld [vmem:[%s3 + $0x88] sm:$0xff]
  %v564 = vld [vmem:[%s3 + $0x90] sm:$0xff]
  %v565 = vld [vmem:[%s3 + $0x98] sm:$0xff]
  %v566 = vld [vmem:[%s3 + $0xa0] sm:$0xff]
  %v567 = vld [vmem:[%s3 + $0xa8] sm:$0xff]
  %v568 = vld [vmem:[%s3 + $0xb0] sm:$0xff]
  %v569 = vld [vmem:[%s3 + $0xb8] sm:$0xff]
  %v570 = vld [vmem:[%s3 + $0xc0] sm:$0xff]
  %v571 = vld [vmem:[%s3 + $0xc8] sm:$0xff]
  %v572 = vld [vmem:[%s3 + $0xd0] sm:$0xff]
  %v573 = vld [vmem:[%s3 + $0xd8] sm:$0xff]
  %v574 = vld [vmem:[%s3 + $0xe0] sm:$0xff]
  %v575 = vld [vmem:[%s3 + $0xe8] sm:$0xff]
  %v576 = vld [vmem:[%s3 + $0xf0] sm:$0xff]
  %v577 = vld [vmem:[%s3 + $0xf8] sm:$0xff]
  %v578 = vld [vmem:[%s3 + $0x100] sm:$0xff]
  %v579 = vld [vmem:[%s3 + $0x108] sm:$0xff]
  %v580 = vld [vmem:[%s3 + $0x110] sm:$0xff]
  %v581 = vld [vmem:[%s3 + $0x118] sm:$0xff]
  %v582 = vld [vmem:[%s3 + $0x120] sm:$0xff]
  %v583 = vld [vmem:[%s3 + $0x128] sm:$0xff]
  %v584 = vld [vmem:[%s3 + $0x130] sm:$0xff]
  %v585 = vld [vmem:[%s3 + $0x138] sm:$0xff]
  %v586 = vld [vmem:[%s3 + $0x140] sm:$0xff]
  %v587 = vld [vmem:[%s3 + $0x148] sm:$0xff]
  %v588 = vld [vmem:[%s3 + $0x150] sm:$0xff]
  %v589 = vld [vmem:[%s3 + $0x158] sm:$0xff]
  %v590 = vld [vmem:[%s3 + $0x160] sm:$0xff]
  %v591 = vld [vmem:[%s3 + $0x168] sm:$0xff]
  %v592 = vld [vmem:[%s3 + $0x170] sm:$0xff]
  %v593 = vld [vmem:[%s3 + $0x178] sm:$0xff]
  %v594 = vld [vmem:[%s3 + $0x180] sm:$0xff]
  %v595 = vld [vmem:[%s3 + $0x188] sm:$0xff]
  %v596 = vld [vmem:[%s3 + $0x190] sm:$0xff]
  %v597 = vld [vmem:[%s3 + $0x198] sm:$0xff]
  %v598 = vld [vmem:[%s3 + $0x1a0] sm:$0xff]
  %v599 = vld [vmem:[%s3 + $0x1a8] sm:$0xff]
  %v600 = vld [vmem:[%s3 + $0x1b0] sm:$0xff]
  %v601 = vld [vmem:[%s3 + $0x1b8] sm:$0xff]
  %v602 = vld [vmem:[%s3 + $0x1c0] sm:$0xff]
  %v603 = vld [vmem:[%s3 + $0x1c8] sm:$0xff]
  %v604 = vld [vmem:[%s3 + $0x1d0] sm:$0xff]
  %v605 = vld [vmem:[%s3 + $0x1d8] sm:$0xff]
  %v606 = vld [vmem:[%s3 + $0x1e0] sm:$0xff]
  %v607 = vld [vmem:[%s3 + $0x1e8] sm:$0xff]
  %v608 = vld [vmem:[%s3 + $0x1f0] sm:$0xff]
  %v609 = vld [vmem:[%s3 + $0x1f8] sm:$0xff]
  %v610 = vld [vmem:[%s5] sm:$0xff]
  %612 = vset.pattern.permute.xlu0 0
  %613 = vperm.xlu0 %612, %v610
  %v614 = vpop.permute.xlu0 %613
  %616 = vmatprep.subr.mxu0 0.0
  %617 = vmatpush1.msra.mxu0 %v546
  %618 = vmatprep.subr.mxu0 0.0
  %619 = vmatpush1.msra.mxu0 %v547
  %620 = vmatprep.subr.mxu0 0.0
  %621 = vmatpush1.msra.mxu0 %v548
  %622 = vmatprep.subr.mxu0 0.0
  %623 = vmatpush1.msra.mxu0 %v549
  %624 = vmatprep.subr.mxu0 0.0
  %625 = vmatpush1.msra.mxu0 %v550
  %626 = vmatprep.subr.mxu0 0.0
  %627 = vmatpush1.msra.mxu0 %v551
  %628 = vmatprep.subr.mxu0 0.0
  %629 = vmatpush1.msra.mxu0 %v552
  %630 = vmatprep.subr.mxu0 0.0
  %631 = vmatpush1.msra.mxu0 %v553
  %632 = vmatprep.subr.mxu0 0.0
  %633 = vmatpush1.msra.mxu0 %v554
  %634 = vmatprep.subr.mxu0 0.0
  %635 = vmatpush1.msra.mxu0 %v555
  %636 = vmatprep.subr.mxu0 0.0
  %637 = vmatpush1.msra.mxu0 %v556
  %638 = vmatprep.subr.mxu0 0.0
  %639 = vmatpush1.msra.mxu0 %v557
  %640 = vmatprep.subr.mxu0 0.0
  %641 = vmatpush1.msra.mxu0 %v558
  %642 = vmatprep.subr.mxu0 0.0
  %643 = vmatpush1.msra.mxu0 %v559
  %644 = vmatprep.subr.mxu0 0.0
  %645 = vmatpush1.msra.mxu0 %v560
  %646 = vmatprep.subr.mxu0 0.0
  %647 = vmatpush1.msra.mxu0 %v561
  %648 = vmatprep.subr.mxu0 0.0
  %649 = vmatpush1.msra.mxu0 %v562
  %650 = vmatprep.subr.mxu0 0.0
  %651 = vmatpush1.msra.mxu0 %v563
  %652 = vmatprep.subr.mxu0 0.0
  %653 = vmatpush1.msra.mxu0 %v564
  %654 = vmatprep.subr.mxu0 0.0
  %655 = vmatpush1.msra.mxu0 %v565
  %656 = vmatprep.subr.mxu0 0.0
  %657 = vmatpush1.msra.mxu0 %v566
  %658 = vmatprep.subr.mxu0 0.0
  %659 = vmatpush1.msra.mxu0 %v567
  %660 = vmatprep.subr.mxu0 0.0
  %661 = vmatpush1.msra.mxu0 %v568
  %662 = vmatprep.subr.mxu0 0.0
  %663 = vmatpush1.msra.mxu0 %v569
  %664 = vmatprep.subr.mxu0 0.0
  %665 = vmatpush1.msra.mxu0 %v570
  %666 = vmatprep.subr.mxu0 0.0
  %667 = vmatpush1.msra.mxu0 %v571
  %668 = vmatprep.subr.mxu0 0.0
  %669 = vmatpush1.msra.mxu0 %v572
  %670 = vmatprep.subr.mxu0 0.0
  %671 = vmatpush1.msra.mxu0 %v573
  %672 = vmatprep.subr.mxu0 0.0
  %673 = vmatpush1.msra.mxu0 %v574
  %674 = vmatprep.subr.mxu0 0.0
  %675 = vmatpush1.msra.mxu0 %v575
  %676 = vmatprep.subr.mxu0 0.0
  %677 = vmatpush1.msra.mxu0 %v576
  %678 = vmatprep.subr.mxu0 0.0
  %679 = vmatpush1.msra.mxu0 %v577
  %680 = vmatprep.mubr.f32.mxu0 %v473
  %681 = vmatmul.mubr.f32.gmra.mrb[0].mxu0 %v471
  %v682 = vpop.f32.mrb[0].mxu0
  %v683 = vadd.f32 %v614, %v682
  %v684 = vpop.f32.mrb[0].mxu0
  %685 = vdwg.mxu0
  %686 = vmatprep.subr.mxu0 0.0
  %687 = vmatpush1.msra.mxu0 %v578
  %688 = vmatprep.subr.mxu0 0.0
  %689 = vmatpush1.msra.mxu0 %v579
  %690 = vmatprep.subr.mxu0 0.0
  %691 = vmatpush1.msra.mxu0 %v580
  %692 = vmatprep.subr.mxu0 0.0
  %693 = vmatpush1.msra.mxu0 %v581
  %694 = vmatprep.subr.mxu0 0.0
  %695 = vmatpush1.msra.mxu0 %v582
  %696 = vmatprep.subr.mxu0 0.0
  %697 = vmatpush1.msra.mxu0 %v583
  %698 = vmatprep.subr.mxu0 0.0
  %699 = vmatpush1.msra.mxu0 %v584
  %700 = vmatprep.subr.mxu0 0.0
  %701 = vmatpush1.msra.mxu0 %v585
  %702 = vmatprep.subr.mxu0 0.0
  %703 = vmatpush1.msra.mxu0 %v586
  %704 = vmatprep.subr.mxu0 0.0
  %705 = vmatpush1.msra.mxu0 %v587
  %706 = vmatprep.subr.mxu0 0.0
  %707 = vmatpush1.msra.mxu0 %v588
  %708 = vmatprep.subr.mxu0 0.0
  %709 = vmatpush1.msra.mxu0 %v589
  %710 = vmatprep.subr.mxu0 0.0
  %711 = vmatpush1.msra.mxu0 %v590
  %712 = vmatprep.subr.mxu0 0.0
  %713 = vmatpush1.msra.mxu0 %v591
  %714 = vmatprep.subr.mxu0 0.0
  %715 = vmatpush1.msra.mxu0 %v592
  %716 = vmatprep.subr.mxu0 0.0
  %717 = vmatpush1.msra.mxu0 %v593
  %718 = vmatprep.subr.mxu0 0.0
  %719 = vmatpush1.msra.mxu0 %v594
  %720 = vmatprep.subr.mxu0 0.0
  %721 = vmatpush1.msra.mxu0 %v595
  %722 = vmatprep.subr.mxu0 0.0
  %723 = vmatpush1.msra.mxu0 %v596
  %724 = vmatprep.subr.mxu0 0.0
  %725 = vmatpush1.msra.mxu0 %v597
  %726 = vmatprep.subr.mxu0 0.0
  %727 = vmatpush1.msra.mxu0 %v598
  %728 = vmatprep.subr.mxu0 0.0
  %729 = vmatpush1.msra.mxu0 %v599
  %730 = vmatprep.subr.mxu0 0.0
  %731 = vmatpush1.msra.mxu0 %v600
  %732 = vmatprep.subr.mxu0 0.0
  %733 = vmatpush1.msra.mxu0 %v601
  %734 = vmatprep.subr.mxu0 0.0
  %735 = vmatpush1.msra.mxu0 %v602
  %736 = vmatprep.subr.mxu0 0.0
  %737 = vmatpush1.msra.mxu0 %v603
  %738 = vmatprep.subr.mxu0 0.0
  %739 = vmatpush1.msra.mxu0 %v604
  %740 = vmatprep.subr.mxu0 0.0
  %741 = vmatpush1.msra.mxu0 %v605
  %742 = vmatprep.subr.mxu0 0.0
  %743 = vmatpush1.msra.mxu0 %v606
  %744 = vmatprep.subr.mxu0 0.0
  %745 = vmatpush1.msra.mxu0 %v607
  %746 = vmatprep.subr.mxu0 0.0
  %747 = vmatpush1.msra.mxu0 %v608
  %748 = vmatprep.subr.mxu0 0.0
  %749 = vmatpush1.msra.mxu0 %v609
  %750 = vmatprep.mubr.f32.mxu0 %v544
  %751 = vmatmul.mubr.f32.gmra.mrb[0].mxu0 %v542
  %v752 = vpop.f32.mrb[0].mxu0
  %v753 = vadd.f32 %v683, %v752
  %v754 = vpop.f32.mrb[0].mxu0
  %755 = vdwg.mxu0
  %v756 = vmax.f32 %v753, 0.0
  %757 = vmatprep.subr.mxu0 0.0
  %758 = vmatpush1.msra.mxu0 %v546
  %759 = vmatprep.subr.mxu0 0.0
  %760 = vmatpush1.msra.mxu0 %v547
  %761 = vmatprep.subr.mxu0 0.0
  %762 = vmatpush1.msra.mxu0 %v548
  %763 = vmatprep.subr.mxu0 0.0
  %764 = vmatpush1.msra.mxu0 %v549
  %765 = vmatprep.subr.mxu0 0.0
  %766 = vmatpush1.msra.mxu0 %v550
  %767 = vmatprep.subr.mxu0 0.0
  %768 = vmatpush1.msra.mxu0 %v551
  %769 = vmatprep.subr.mxu0 0.0
  %770 = vmatpush1.msra.mxu0 %v552
  %771 = vmatprep.subr.mxu0 0.0
  %772 = vmatpush1.msra.mxu0 %v553
  %773 = vmatprep.subr.mxu0 0.0
  %774 = vmatpush1.msra.mxu0 %v554
  %775 = vmatprep.subr.mxu0 0.0
  %776 = vmatpush1.msra.mxu0 %v555
  %777 = vmatprep.subr.mxu0 0.0
  %778 = vmatpush1.msra.mxu0 %v556
  %779 = vmatprep.subr.mxu0 0.0
  %780 = vmatpush1.msra.mxu0 %v557
  %781 = vmatprep.subr.mxu0 0.0
  %782 = vmatpush1.msra.mxu0 %v558
  %783 = vmatprep.subr.mxu0 0.0
  %784 = vmatpush1.msra.mxu0 %v559
  %785 = vmatprep.subr.mxu0 0.0
  %786 = vmatpush1.msra.mxu0 %v560
  %787 = vmatprep.subr.mxu0 0.0
  %788 = vmatpush1.msra.mxu0 %v561
  %789 = vmatprep.subr.mxu0 0.0
  %790 = vmatpush1.msra.mxu0 %v562
  %791 = vmatprep.subr.mxu0 0.0
  %792 = vmatpush1.msra.mxu0 %v563
  %793 = vmatprep.subr.mxu0 0.0
  %794 = vmatpush1.msra.mxu0 %v564
  %795 = vmatprep.subr.mxu0 0.0
  %796 = vmatpush1.msra.mxu0 %v565
  %797 = vmatprep.subr.mxu0 0.0
  %798 = vmatpush1.msra.mxu0 %v566
  %799 = vmatprep.subr.mxu0 0.0
  %800 = vmatpush1.msra.mxu0 %v567
  %801 = vmatprep.subr.mxu0 0.0
  %802 = vmatpush1.msra.mxu0 %v568
  %803 = vmatprep.subr.mxu0 0.0
  %804 = vmatpush1.msra.mxu0 %v569
  %805 = vmatprep.subr.mxu0 0.0
  %806 = vmatpush1.msra.mxu0 %v570
  %807 = vmatprep.subr.mxu0 0.0
  %808 = vmatpush1.msra.mxu0 %v571
  %809 = vmatprep.subr.mxu0 0.0
  %810 = vmatpush1.msra.mxu0 %v572
  %811 = vmatprep.subr.mxu0 0.0
  %812 = vmatpush1.msra.mxu0 %v573
  %813 = vmatprep.subr.mxu0 0.0
  %814 = vmatpush1.msra.mxu0 %v574
  %815 = vmatprep.subr.mxu0 0.0
  %816 = vmatpush1.msra.mxu0 %v575
  %817 = vmatprep.subr.mxu0 0.0
  %818 = vmatpush1.msra.mxu0 %v576
  %819 = vmatprep.subr.mxu0 0.0
  %820 = vmatpush1.msra.mxu0 %v577
  %821 = vmatprep.mubr.f32.mxu0 %v48
  %822 = vmatmul.mubr.f32.gmra.mrb[0].mxu0 %v47
  %v823 = vpop.f32.mrb[0].mxu0
  %v824 = vadd.f32 0.0, %v823
  %v825 = vpop.f32.mrb[0].mxu0
  %826 = vdwg.mxu0
  %827 = vmatprep.subr.mxu0 0.0
  %828 = vmatpush1.msra.mxu0 %v578
  %829 = vmatprep.subr.mxu0 0.0
  %830 = vmatpush1.msra.mxu0 %v579
  %831 = vmatprep.subr.mxu0 0.0
  %832 = vmatpush1.msra.mxu0 %v580
  %833 = vmatprep.subr.mxu0 0.0
  %834 = vmatpush1.msra.mxu0 %v581
  %835 = vmatprep.subr.mxu0 0.0
  %836 = vmatpush1.msra.mxu0 %v582
  %837 = vmatprep.subr.mxu0 0.0
  %838 = vmatpush1.msra.mxu0 %v583
  %839 = vmatprep.subr.mxu0 0.0
  %840 = vmatpush1.msra.mxu0 %v584
  %841 = vmatprep.subr.mxu0 0.0
  %842 = vmatpush1.msra.mxu0 %v585
  %843 = vmatprep.subr.mxu0 0.0
  %844 = vmatpush1.msra.mxu0 %v586
  %845 = vmatprep.subr.mxu0 0.0
  %846 = vmatpush1.msra.mxu0 %v587
  %847 = vmatprep.subr.mxu0 0.0
  %848 = vmatpush1.msra.mxu0 %v588
  %849 = vmatprep.subr.mxu0 0.0
  %850 = vmatpush1.msra.mxu0 %v589
  %851 = vmatprep.subr.mxu0 0.0
  %852 = vmatpush1.msra.mxu0 %v590
  %853 = vmatprep.subr.mxu0 0.0
  %854 = vmatpush1.msra.mxu0 %v591
  %855 = vmatprep.subr.mxu0 0.0
  %856 = vmatpush1.msra.mxu0 %v592
  %857 = vmatprep.subr.mxu0 0.0
  %858 = vmatpush1.msra.mxu0 %v593
  %859 = vmatprep.subr.mxu0 0.0
  %860 = vmatpush1.msra.mxu0 %v594
  %861 = vmatprep.subr.mxu0 0.0
  %862 = vmatpush1.msra.mxu0 %v595
  %863 = vmatprep.subr.mxu0 0.0
  %864 = vmatpush1.msra.mxu0 %v596
  %865 = vmatprep.subr.mxu0 0.0
  %866 = vmatpush1.msra.mxu0 %v597
  %867 = vmatprep.subr.mxu0 0.0
  %868 = vmatpush1.msra.mxu0 %v598
  %869 = vmatprep.subr.mxu0 0.0
  %870 = vmatpush1.msra.mxu0 %v599
  %871 = vmatprep.subr.mxu0 0.0
  %872 = vmatpush1.msra.mxu0 %v600
  %873 = vmatprep.subr.mxu0 0.0
  %874 = vmatpush1.msra.mxu0 %v601
  %875 = vmatprep.subr.mxu0 0.0
  %876 = vmatpush1.msra.mxu0 %v602
  %877 = vmatprep.subr.mxu0 0.0
  %878 = vmatpush1.msra.mxu0 %v603
  %879 = vmatprep.subr.mxu0 0.0
  %880 = vmatpush1.msra.mxu0 %v604
  %881 = vmatprep.subr.mxu0 0.0
  %882 = vmatpush1.msra.mxu0 %v605
  %883 = vmatprep.subr.mxu0 0.0
  %884 = vmatpush1.msra.mxu0 %v606
  %885 = vmatprep.subr.mxu0 0.0
  %886 = vmatpush1.msra.mxu0 %v607
  %887 = vmatprep.subr.mxu0 0.0
  %888 = vmatpush1.msra.mxu0 %v608
  %889 = vmatprep.subr.mxu0 0.0
  %890 = vmatpush1.msra.mxu0 %v609
  %891 = vmatprep.mubr.f32.mxu0 %v50
  %892 = vmatmul.mubr.f32.gmra.mrb[0].mxu0 %v49
  %v893 = vpop.f32.mrb[0].mxu0
  %v894 = vadd.f32 %v824, %v893
  %v895 = vpop.f32.mrb[0].mxu0
  %896 = vdwg.mxu0
  %v897 = vld [vmem:[%s6] sm:$0xff]
  %v898 = vld [vmem:[%s7] sm:$0xff]
  %900 = vset.pattern.permute.xlu0 0
  %901 = vperm.xlu0 %900, %v898
  %v902 = vpop.permute.xlu0 %901
  %vm904 = vcmask 64512
  %v906 = vsel %vm904, %v897, 0
  %908 = vmatprep.subr.mxu0 0.0
  %909 = vmatpush1.msra.mxu0 %v894
  %910 = vmatprep.subr.mxu0 0.0
  %911 = vmatpush1.msra.mxu0 0.0
  %912 = vmatprep.subr.mxu0 0.0
  %913 = vmatpush1.msra.mxu0 0.0
  %914 = vmatprep.subr.mxu0 0.0
  %915 = vmatpush1.msra.mxu0 0.0
  %916 = vmatprep.subr.mxu0 0.0
  %917 = vmatpush1.msra.mxu0 0.0
  %918 = vmatprep.subr.mxu0 0.0
  %919 = vmatpush1.msra.mxu0 0.0
  %920 = vmatprep.subr.mxu0 0.0
  %921 = vmatpush1.msra.mxu0 0.0
  %922 = vmatprep.subr.mxu0 0.0
  %923 = vmatpush1.msra.mxu0 0.0
  %924 = vmatprep.subr.mxu0 0.0
  %925 = vmatpush1.msra.mxu0 0.0
  %926 = vmatprep.subr.mxu0 0.0
  %927 = vmatpush1.msra.mxu0 0.0
  %928 = vmatprep.subr.mxu0 0.0
  %929 = vmatpush1.msra.mxu0 0.0
  %930 = vmatprep.subr.mxu0 0.0
  %931 = vmatpush1.msra.mxu0 0.0
  %932 = vmatprep.subr.mxu0 0.0
  %933 = vmatpush1.msra.mxu0 0.0
  %934 = vmatprep.subr.mxu0 0.0
  %935 = vmatpush1.msra.mxu0 0.0
  %936 = vmatprep.subr.mxu0 0.0
  %937 = vmatpush1.msra.mxu0 0.0
  %938 = vmatprep.subr.mxu0 0.0
  %939 = vmatpush1.msra.mxu0 0.0
  %940 = vmatprep.subr.mxu0 0.0
  %941 = vmatpush1.msra.mxu0 0.0
  %942 = vmatprep.subr.mxu0 0.0
  %943 = vmatpush1.msra.mxu0 0.0
  %944 = vmatprep.subr.mxu0 0.0
  %945 = vmatpush1.msra.mxu0 0.0
  %946 = vmatprep.subr.mxu0 0.0
  %947 = vmatpush1.msra.mxu0 0.0
  %948 = vmatprep.subr.mxu0 0.0
  %949 = vmatpush1.msra.mxu0 0.0
  %950 = vmatprep.subr.mxu0 0.0
  %951 = vmatpush1.msra.mxu0 0.0
  %952 = vmatprep.subr.mxu0 0.0
  %953 = vmatpush1.msra.mxu0 0.0
  %954 = vmatprep.subr.mxu0 0.0
  %955 = vmatpush1.msra.mxu0 0.0
  %956 = vmatprep.subr.mxu0 0.0
  %957 = vmatpush1.msra.mxu0 0.0
  %958 = vmatprep.subr.mxu0 0.0
  %959 = vmatpush1.msra.mxu0 0.0
  %960 = vmatprep.subr.mxu0 0.0
  %961 = vmatpush1.msra.mxu0 0.0
  %962 = vmatprep.subr.mxu0 0.0
  %963 = vmatpush1.msra.mxu0 0.0
  %964 = vmatprep.subr.mxu0 0.0
  %965 = vmatpush1.msra.mxu0 0.0
  %966 = vmatprep.subr.mxu0 0.0
  %967 = vmatpush1.msra.mxu0 0.0
  %968 = vmatprep.subr.mxu0 0.0
  %969 = vmatpush1.msra.mxu0 0.0
  %970 = vmatprep.subr.mxu0 0.0
  %971 = vmatpush1.msra.mxu0 0.0
  %972 = vmatprep.mubr.f32.mxu0 0.0
  %973 = vmatmul.mubr.f32.gmra.mrb[0].mxu0 %v906
  %v974 = vpop.f32.mrb[0].mxu0
  %v975 = vadd.f32 %v902, %v974
  %v976 = vpop.f32.mrb[0].mxu0
  %977 = vdwg.mxu0
  %978 = vrot.lane.b32.xlu0 %v756, 9
  %v979 = vpop.permute.xlu0 %978
  %v980 = vld [vmem:[%s2] sm:$0x1]
  %v982 = vlaneseq
  %v983 = vshrl.u32 %v982, 7
  %v984 = vsub.s32 0, %v983
  %v985 = vrot.slane %v980, %v984
  %v987 = vmul.f32 %v979, %v985
  %988 = vrot.lane.b32.xlu0 %v756, 8
  %v989 = vpop.permute.xlu0 %988
  %s990 = scalar_lea.vmem %s2, 1
  %v991 = vld [vmem:[%s990] sm:$0x1]
  %v993 = vlaneseq
  %v994 = vshrl.u32 %v993, 7
  %v995 = vsub.s32 0, %v994
  %v996 = vrot.slane %v991, %v995
  %v998 = vmul.f32 %v989, %v996
  %999 = vrot.lane.b32.xlu0 %v756, 7
  %v1000 = vpop.permute.xlu0 %999
  %s1001 = scalar_lea.vmem %s2, 2
  %v1002 = vld [vmem:[%s1001] sm:$0x1]
  %v1004 = vlaneseq
  %v1005 = vshrl.u32 %v1004, 7
  %v1006 = vsub.s32 0, %v1005
  %v1007 = vrot.slane %v1002, %v1006
  %v1009 = vmul.f32 %v1000, %v1007
  %1010 = vrot.lane.b32.xlu0 %v756, 1
  %v1011 = vpop.permute.xlu0 %1010
  %s1012 = scalar_lea.vmem %s2, 3
  %v1013 = vld [vmem:[%s1012] sm:$0x1]
  %v1015 = vlaneseq
  %v1016 = vshrl.u32 %v1015, 7
  %v1017 = vsub.s32 0, %v1016
  %v1018 = vrot.slane %v1013, %v1017
  %v1020 = vmul.f32 %v1011, %v1018
  %s1021 = scalar_lea.vmem %s2, 4
  %v1022 = vld [vmem:[%s1021] sm:$0x1]
  %v1024 = vlaneseq
  %v1025 = vshrl.u32 %v1024, 7
  %v1026 = vsub.s32 0, %v1025
  %v1027 = vrot.slane %v1022, %v1026
  %v1029 = vmul.f32 %v756, %v1027
  %1030 = vrot.lane.b32.xlu0 %v756, 127
  %v1031 = vpop.permute.xlu0 %1030
  %s1032 = scalar_lea.vmem %s2, 5
  %v1033 = vld [vmem:[%s1032] sm:$0x1]
  %v1035 = vlaneseq
  %v1036 = vshrl.u32 %v1035, 7
  %v1037 = vsub.s32 0, %v1036
  %v1038 = vrot.slane %v1033, %v1037
  %v1040 = vmul.f32 %v1031, %v1038
  %1041 = vrot.lane.b32.xlu0 %v756, 121
  %v1042 = vpop.permute.xlu0 %1041
  %s1043 = scalar_lea.vmem %s2, 6
  %v1044 = vld [vmem:[%s1043] sm:$0x1]
  %v1046 = vlaneseq
  %v1047 = vshrl.u32 %v1046, 7
  %v1048 = vsub.s32 0, %v1047
  %v1049 = vrot.slane %v1044, %v1048
  %v1051 = vmul.f32 %v1042, %v1049
  %1052 = vrot.lane.b32.xlu0 %v756, 120
  %v1053 = vpop.permute.xlu0 %1052
  %s1054 = scalar_lea.vmem %s2, 7
  %v1055 = vld [vmem:[%s1054] sm:$0x1]
  %v1057 = vlaneseq
  %v1058 = vshrl.u32 %v1057, 7
  %v1059 = vsub.s32 0, %v1058
  %v1060 = vrot.slane %v1055, %v1059
  %v1062 = vmul.f32 %v1053, %v1060
  %1063 = vrot.lane.b32.xlu0 %v756, 119
  %v1064 = vpop.permute.xlu0 %1063
  %s1065 = scalar_lea.vmem %s2, 8
  %v1066 = vld [vmem:[%s1065] sm:$0x1]
  %v1068 = vlaneseq
  %v1069 = vshrl.u32 %v1068, 7
  %v1070 = vsub.s32 0, %v1069
  %v1071 = vrot.slane %v1066, %v1070
  %v1073 = vmul.f32 %v1064, %v1071
  %v1074 = vld [vmem:[%s8] sm:$0xff]
  %v1075 = vld [vmem:[%s9] sm:$0xff]
  %1077 = vset.pattern.permute.xlu0 0
  %1078 = vperm.xlu0 %1077, %v1075
  %v1079 = vpop.permute.xlu0 %1078
  %v1082 = vsel %vm400, %v1074, 0
  %1084 = vmatprep.subr.mxu0 0.0
  %1085 = vmatpush1.msra.mxu0 %v987
  %1086 = vmatprep.subr.mxu0 0.0
  %1087 = vmatpush1.msra.mxu0 %v998
  %1088 = vmatprep.subr.mxu0 0.0
  %1089 = vmatpush1.msra.mxu0 %v1009
  %1090 = vmatprep.subr.mxu0 0.0
  %1091 = vmatpush1.msra.mxu0 %v1020
  %1092 = vmatprep.subr.mxu0 0.0
  %1093 = vmatpush1.msra.mxu0 %v1029
  %1094 = vmatprep.subr.mxu0 0.0
  %1095 = vmatpush1.msra.mxu0 %v1040
  %1096 = vmatprep.subr.mxu0 0.0
  %1097 = vmatpush1.msra.mxu0 %v1051
  %1098 = vmatprep.subr.mxu0 0.0
  %1099 = vmatpush1.msra.mxu0 %v1062
  %1100 = vmatprep.subr.mxu0 0.0
  %1101 = vmatpush1.msra.mxu0 %v1073
  %1102 = vmatprep.subr.mxu0 0.0
  %1103 = vmatpush1.msra.mxu0 0.0
  %1104 = vmatprep.subr.mxu0 0.0
  %1105 = vmatpush1.msra.mxu0 0.0
  %1106 = vmatprep.subr.mxu0 0.0
  %1107 = vmatpush1.msra.mxu0 0.0
  %1108 = vmatprep.subr.mxu0 0.0
  %1109 = vmatpush1.msra.mxu0 0.0
  %1110 = vmatprep.subr.mxu0 0.0
  %1111 = vmatpush1.msra.mxu0 0.0
  %1112 = vmatprep.subr.mxu0 0.0
  %1113 = vmatpush1.msra.mxu0 0.0
  %1114 = vmatprep.subr.mxu0 0.0
  %1115 = vmatpush1.msra.mxu0 0.0
  %1116 = vmatprep.subr.mxu0 0.0
  %1117 = vmatpush1.msra.mxu0 0.0
  %1118 = vmatprep.subr.mxu0 0.0
  %1119 = vmatpush1.msra.mxu0 0.0
  %1120 = vmatprep.subr.mxu0 0.0
  %1121 = vmatpush1.msra.mxu0 0.0
  %1122 = vmatprep.subr.mxu0 0.0
  %1123 = vmatpush1.msra.mxu0 0.0
  %1124 = vmatprep.subr.mxu0 0.0
  %1125 = vmatpush1.msra.mxu0 0.0
  %1126 = vmatprep.subr.mxu0 0.0
  %1127 = vmatpush1.msra.mxu0 0.0
  %1128 = vmatprep.subr.mxu0 0.0
  %1129 = vmatpush1.msra.mxu0 0.0
  %1130 = vmatprep.subr.mxu0 0.0
  %1131 = vmatpush1.msra.mxu0 0.0
  %1132 = vmatprep.subr.mxu0 0.0
  %1133 = vmatpush1.msra.mxu0 0.0
  %1134 = vmatprep.subr.mxu0 0.0
  %1135 = vmatpush1.msra.mxu0 0.0
  %1136 = vmatprep.subr.mxu0 0.0
  %1137 = vmatpush1.msra.mxu0 0.0
  %1138 = vmatprep.subr.mxu0 0.0
  %1139 = vmatpush1.msra.mxu0 0.0
  %1140 = vmatprep.subr.mxu0 0.0
  %1141 = vmatpush1.msra.mxu0 0.0
  %1142 = vmatprep.subr.mxu0 0.0
  %1143 = vmatpush1.msra.mxu0 0.0
  %1144 = vmatprep.subr.mxu0 0.0
  %1145 = vmatpush1.msra.mxu0 0.0
  %1146 = vmatprep.subr.mxu0 0.0
  %1147 = vmatpush1.msra.mxu0 0.0
  %1148 = vmatprep.mubr.f32.mxu0 0.0
  %1149 = vmatmul.mubr.f32.gmra.mrb[0].mxu0 %v1082
  %v1150 = vpop.f32.mrb[0].mxu0
  %v1151 = vadd.f32 %v1079, %v1150
  %v1152 = vpop.f32.mrb[0].mxu0
  %1153 = vdwg.mxu0
  %v1154 = vadd.f32 %v1151, %v975
  %v1155 = vmax.f32 %v1154, 0.0
  %1156 = vrot.lane.b32.xlu0 %v1155, 9
  %v1157 = vpop.permute.xlu0 %1156
  %v1158 = vmul.f32 %v1157, %v985
  %1159 = vrot.lane.b32.xlu0 %v1155, 8
  %v1160 = vpop.permute.xlu0 %1159
  %v1161 = vmul.f32 %v1160, %v996
  %1162 = vrot.lane.b32.xlu0 %v1155, 7
  %v1163 = vpop.permute.xlu0 %1162
  %v1164 = vmul.f32 %v1163, %v1007
  %1165 = vrot.lane.b32.xlu0 %v1155, 1
  %v1166 = vpop.permute.xlu0 %1165
  %v1167 = vmul.f32 %v1166, %v1018
  %v1168 = vmul.f32 %v1155, %v1027
  %1169 = vrot.lane.b32.xlu0 %v1155, 127
  %v1170 = vpop.permute.xlu0 %1169
  %v1171 = vmul.f32 %v1170, %v1038
  %1172 = vrot.lane.b32.xlu0 %v1155, 121
  %v1173 = vpop.permute.xlu0 %1172
  %v1174 = vmul.f32 %v1173, %v1049
  %1175 = vrot.lane.b32.xlu0 %v1155, 120
  %v1176 = vpop.permute.xlu0 %1175
  %v1177 = vmul.f32 %v1176, %v1060
  %1178 = vrot.lane.b32.xlu0 %v1155, 119
  %v1179 = vpop.permute.xlu0 %1178
  %v1180 = vmul.f32 %v1179, %v1071
  %v1181 = vld [vmem:[%s10] sm:$0xff]
  %v1182 = vld [vmem:[%s11] sm:$0xff]
  %1184 = vset.pattern.permute.xlu0 0
  %1185 = vperm.xlu0 %1184, %v1182
  %v1186 = vpop.permute.xlu0 %1185
  %v1189 = vsel %vm400, %v1181, 0
  %1191 = vmatprep.subr.mxu0 0.0
  %1192 = vmatpush1.msra.mxu0 %v1158
  %1193 = vmatprep.subr.mxu0 0.0
  %1194 = vmatpush1.msra.mxu0 %v1161
  %1195 = vmatprep.subr.mxu0 0.0
  %1196 = vmatpush1.msra.mxu0 %v1164
  %1197 = vmatprep.subr.mxu0 0.0
  %1198 = vmatpush1.msra.mxu0 %v1167
  %1199 = vmatprep.subr.mxu0 0.0
  %1200 = vmatpush1.msra.mxu0 %v1168
  %1201 = vmatprep.subr.mxu0 0.0
  %1202 = vmatpush1.msra.mxu0 %v1171
  %1203 = vmatprep.subr.mxu0 0.0
  %1204 = vmatpush1.msra.mxu0 %v1174
  %1205 = vmatprep.subr.mxu0 0.0
  %1206 = vmatpush1.msra.mxu0 %v1177
  %1207 = vmatprep.subr.mxu0 0.0
  %1208 = vmatpush1.msra.mxu0 %v1180
  %1209 = vmatprep.subr.mxu0 0.0
  %1210 = vmatpush1.msra.mxu0 0.0
  %1211 = vmatprep.subr.mxu0 0.0
  %1212 = vmatpush1.msra.mxu0 0.0
  %1213 = vmatprep.subr.mxu0 0.0
  %1214 = vmatpush1.msra.mxu0 0.0
  %1215 = vmatprep.subr.mxu0 0.0
  %1216 = vmatpush1.msra.mxu0 0.0
  %1217 = vmatprep.subr.mxu0 0.0
  %1218 = vmatpush1.msra.mxu0 0.0
  %1219 = vmatprep.subr.mxu0 0.0
  %1220 = vmatpush1.msra.mxu0 0.0
  %1221 = vmatprep.subr.mxu0 0.0
  %1222 = vmatpush1.msra.mxu0 0.0
  %1223 = vmatprep.subr.mxu0 0.0
  %1224 = vmatpush1.msra.mxu0 0.0
  %1225 = vmatprep.subr.mxu0 0.0
  %1226 = vmatpush1.msra.mxu0 0.0
  %1227 = vmatprep.subr.mxu0 0.0
  %1228 = vmatpush1.msra.mxu0 0.0
  %1229 = vmatprep.subr.mxu0 0.0
  %1230 = vmatpush1.msra.mxu0 0.0
  %1231 = vmatprep.subr.mxu0 0.0
  %1232 = vmatpush1.msra.mxu0 0.0
  %1233 = vmatprep.subr.mxu0 0.0
  %1234 = vmatpush1.msra.mxu0 0.0
  %1235 = vmatprep.subr.mxu0 0.0
  %1236 = vmatpush1.msra.mxu0 0.0
  %1237 = vmatprep.subr.mxu0 0.0
  %1238 = vmatpush1.msra.mxu0 0.0
  %1239 = vmatprep.subr.mxu0 0.0
  %1240 = vmatpush1.msra.mxu0 0.0
  %1241 = vmatprep.subr.mxu0 0.0
  %1242 = vmatpush1.msra.mxu0 0.0
  %1243 = vmatprep.subr.mxu0 0.0
  %1244 = vmatpush1.msra.mxu0 0.0
  %1245 = vmatprep.subr.mxu0 0.0
  %1246 = vmatpush1.msra.mxu0 0.0
  %1247 = vmatprep.subr.mxu0 0.0
  %1248 = vmatpush1.msra.mxu0 0.0
  %1249 = vmatprep.subr.mxu0 0.0
  %1250 = vmatpush1.msra.mxu0 0.0
  %1251 = vmatprep.subr.mxu0 0.0
  %1252 = vmatpush1.msra.mxu0 0.0
  %1253 = vmatprep.subr.mxu0 0.0
  %1254 = vmatpush1.msra.mxu0 0.0
  %1255 = vmatprep.mubr.f32.mxu0 0.0
  %1256 = vmatmul.mubr.f32.gmra.mrb[0].mxu0 %v1189
  %v1257 = vpop.f32.mrb[0].mxu0
  %v1258 = vadd.f32 %v1186, %v1257
  %v1259 = vpop.f32.mrb[0].mxu0
  %1260 = vdwg.mxu0
  %v1261 = vmax.f32 %v1258, 0.0
  %1262 = vrot.lane.b32.xlu0 %v1261, 9
  %v1263 = vpop.permute.xlu0 %1262
  %v1264 = vmul.f32 %v1263, %v985
  %1265 = vrot.lane.b32.xlu0 %v1261, 8
  %v1266 = vpop.permute.xlu0 %1265
  %v1267 = vmul.f32 %v1266, %v996
  %1268 = vrot.lane.b32.xlu0 %v1261, 7
  %v1269 = vpop.permute.xlu0 %1268
  %v1270 = vmul.f32 %v1269, %v1007
  %1271 = vrot.lane.b32.xlu0 %v1261, 1
  %v1272 = vpop.permute.xlu0 %1271
  %v1273 = vmul.f32 %v1272, %v1018
  %v1274 = vmul.f32 %v1261, %v1027
  %1275 = vrot.lane.b32.xlu0 %v1261, 127
  %v1276 = vpop.permute.xlu0 %1275
  %v1277 = vmul.f32 %v1276, %v1038
  %1278 = vrot.lane.b32.xlu0 %v1261, 121
  %v1279 = vpop.permute.xlu0 %1278
  %v1280 = vmul.f32 %v1279, %v1049
  %1281 = vrot.lane.b32.xlu0 %v1261, 120
  %v1282 = vpop.permute.xlu0 %1281
  %v1283 = vmul.f32 %v1282, %v1060
  %1284 = vrot.lane.b32.xlu0 %v1261, 119
  %v1285 = vpop.permute.xlu0 %1284
  %v1286 = vmul.f32 %v1285, %v1071
  %v1287 = vld [vmem:[%s12] sm:$0xff]
  %v1288 = vld [vmem:[%s13] sm:$0xff]
  %1290 = vset.pattern.permute.xlu0 0
  %1291 = vperm.xlu0 %1290, %v1288
  %v1292 = vpop.permute.xlu0 %1291
  %v1295 = vsel %vm400, %v1287, 0
  %1297 = vmatprep.subr.mxu0 0.0
  %1298 = vmatpush1.msra.mxu0 %v1264
  %1299 = vmatprep.subr.mxu0 0.0
  %1300 = vmatpush1.msra.mxu0 %v1267
  %1301 = vmatprep.subr.mxu0 0.0
  %1302 = vmatpush1.msra.mxu0 %v1270
  %1303 = vmatprep.subr.mxu0 0.0
  %1304 = vmatpush1.msra.mxu0 %v1273
  %1305 = vmatprep.subr.mxu0 0.0
  %1306 = vmatpush1.msra.mxu0 %v1274
  %1307 = vmatprep.subr.mxu0 0.0
  %1308 = vmatpush1.msra.mxu0 %v1277
  %1309 = vmatprep.subr.mxu0 0.0
  %1310 = vmatpush1.msra.mxu0 %v1280
  %1311 = vmatprep.subr.mxu0 0.0
  %1312 = vmatpush1.msra.mxu0 %v1283
  %1313 = vmatprep.subr.mxu0 0.0
  %1314 = vmatpush1.msra.mxu0 %v1286
  %1315 = vmatprep.subr.mxu0 0.0
  %1316 = vmatpush1.msra.mxu0 0.0
  %1317 = vmatprep.subr.mxu0 0.0
  %1318 = vmatpush1.msra.mxu0 0.0
  %1319 = vmatprep.subr.mxu0 0.0
  %1320 = vmatpush1.msra.mxu0 0.0
  %1321 = vmatprep.subr.mxu0 0.0
  %1322 = vmatpush1.msra.mxu0 0.0
  %1323 = vmatprep.subr.mxu0 0.0
  %1324 = vmatpush1.msra.mxu0 0.0
  %1325 = vmatprep.subr.mxu0 0.0
  %1326 = vmatpush1.msra.mxu0 0.0
  %1327 = vmatprep.subr.mxu0 0.0
  %1328 = vmatpush1.msra.mxu0 0.0
  %1329 = vmatprep.subr.mxu0 0.0
  %1330 = vmatpush1.msra.mxu0 0.0
  %1331 = vmatprep.subr.mxu0 0.0
  %1332 = vmatpush1.msra.mxu0 0.0
  %1333 = vmatprep.subr.mxu0 0.0
  %1334 = vmatpush1.msra.mxu0 0.0
  %1335 = vmatprep.subr.mxu0 0.0
  %1336 = vmatpush1.msra.mxu0 0.0
  %1337 = vmatprep.subr.mxu0 0.0
  %1338 = vmatpush1.msra.mxu0 0.0
  %1339 = vmatprep.subr.mxu0 0.0
  %1340 = vmatpush1.msra.mxu0 0.0
  %1341 = vmatprep.subr.mxu0 0.0
  %1342 = vmatpush1.msra.mxu0 0.0
  %1343 = vmatprep.subr.mxu0 0.0
  %1344 = vmatpush1.msra.mxu0 0.0
  %1345 = vmatprep.subr.mxu0 0.0
  %1346 = vmatpush1.msra.mxu0 0.0
  %1347 = vmatprep.subr.mxu0 0.0
  %1348 = vmatpush1.msra.mxu0 0.0
  %1349 = vmatprep.subr.mxu0 0.0
  %1350 = vmatpush1.msra.mxu0 0.0
  %1351 = vmatprep.subr.mxu0 0.0
  %1352 = vmatpush1.msra.mxu0 0.0
  %1353 = vmatprep.subr.mxu0 0.0
  %1354 = vmatpush1.msra.mxu0 0.0
  %1355 = vmatprep.subr.mxu0 0.0
  %1356 = vmatpush1.msra.mxu0 0.0
  %1357 = vmatprep.subr.mxu0 0.0
  %1358 = vmatpush1.msra.mxu0 0.0
  %1359 = vmatprep.subr.mxu0 0.0
  %1360 = vmatpush1.msra.mxu0 0.0
  %1361 = vmatprep.mubr.f32.mxu0 0.0
  %1362 = vmatmul.mubr.f32.gmra.mrb[0].mxu0 %v1295
  %v1363 = vpop.f32.mrb[0].mxu0
  %v1364 = vadd.f32 %v1292, %v1363
  %v1365 = vpop.f32.mrb[0].mxu0
  %1366 = vdwg.mxu0
  %v1367 = vadd.f32 %v1364, %v1155
  %v1368 = vmax.f32 %v1367, 0.0
  %1369 = vst [vmem:[%s14] sm:$0xff] %v1368
  // Predicated region
  $region58: #{encoder_forward.1} parent=0 // pred_check
    _
  $region59: #{encoder_forward.1} parent=0 // pred_check_branch
    %1371 = sbr.rel (0) target = $region61
  $region60: #{encoder_forward.1} parent=0 // pred_region
    _
  $region61: #{encoder_forward.1} parent=0 // pred_fallthru
    _
  // Predicated region
  $region62: #{encoder_forward.1} parent=0 // pred_check
    _
  $region63: #{encoder_forward.1} parent=0 // pred_check_branch
    %1373 = sbr.rel (0) target = $region65
  $region64: #{encoder_forward.1} parent=0 // pred_region
    _
  $region65: #{encoder_forward.1} parent=0 // pred_fallthru
    _

</llo_original>
